<compile_context>
chip_gen: v5e
topology: v5e:2x2
jax: 0.10.0
libtpu: 0.0.40
codegen_flags: <defaults>
</compile_context>

<pallas_src>
import functools

import jax
import jax.numpy as jnp
from jax.experimental import pallas as pl
from jax.experimental.pallas import tpu as pltpu


# ---------------------------------------------------------------------------
# Fused kernel: embed -> n_layers LSTMCells -> mu/logvar heads -> reparam
# ---------------------------------------------------------------------------
def _gaussian_lstm_kernel(x_ref, w_emb_ref, b_emb_ref,
                          w_ih_ref, w_hh_ref, b_gates_ref,
                          w_mu_ref, b_mu_ref, w_lv_ref, b_lv_ref,
                          h0_ref, c0_ref, eps_ref,
                          z_ref, mu_ref, lv_ref, h1_ref, c1_ref,
                          *, n_layers, hidden_size):
    H = hidden_size

    # embed = Linear(input_size, hidden_size)
    h = (jnp.dot(x_ref[...], w_emb_ref[...],
                 preferred_element_type=jnp.float32) + b_emb_ref[...])

    # stacked LSTMCells (PyTorch gate order: i, f, g, o)
    for layer in range(n_layers):          # n_layers is small & static
        h_prev = h0_ref[layer]             # (tb, H)
        c_prev = c0_ref[layer]             # (tb, H)
        gates = (jnp.dot(h, w_ih_ref[layer],
                         preferred_element_type=jnp.float32)
                 + jnp.dot(h_prev, w_hh_ref[layer],
                           preferred_element_type=jnp.float32)
                 + b_gates_ref[layer])     # (tb, 4H), 4H lane-aligned
        i_g = jax.nn.sigmoid(gates[:, 0 * H:1 * H])
        f_g = jax.nn.sigmoid(gates[:, 1 * H:2 * H])
        g_g = jnp.tanh(gates[:, 2 * H:3 * H])
        o_g = jax.nn.sigmoid(gates[:, 3 * H:4 * H])
        c_new = f_g * c_prev + i_g * g_g
        h_new = o_g * jnp.tanh(c_new)
        h1_ref[layer] = h_new
        c1_ref[layer] = c_new
        h = h_new

    # mu / logvar heads + reparameterization (z = eps * exp(0.5*logvar) + mu)
    mu = (jnp.dot(h, w_mu_ref[...],
                  preferred_element_type=jnp.float32) + b_mu_ref[...])
    lv = (jnp.dot(h, w_lv_ref[...],
                  preferred_element_type=jnp.float32) + b_lv_ref[...])
    z = eps_ref[...] * jnp.exp(0.5 * lv) + mu

    z_ref[...] = z
    mu_ref[...] = mu
    lv_ref[...] = lv


# ---------------------------------------------------------------------------
# Wrapper: pallas_call with batch-tiled grid, VMEM-resident weights
# ---------------------------------------------------------------------------
def gaussian_lstm_forward(x, params, hidden, eps, *, tb=8):
    """One forward step of gaussian_lstm.

    x:      (..., input_size)   -> flattened to (B, input_size) like .view()
    params: (w_emb(In,H), b_emb(1,H), w_ih(L,H,4H), w_hh(L,H,4H),
             b_gates(L,1,4H), w_mu(H,O), b_mu(1,O), w_lv(H,O), b_lv(1,O))
    hidden: (h0, c0) each (L, B, H)      (functional version of self.hidden)
    eps:    (B, O) standard-normal noise for reparameterization
    returns (z, mu, logvar, h_new, c_new)
    """
    w_emb, b_emb, w_ih, w_hh, b_gates, w_mu, b_mu, w_lv, b_lv = params
    h0, c0 = hidden

    input_size = w_emb.shape[0]
    H = w_emb.shape[1]
    out_size = w_mu.shape[1]
    n_layers = w_ih.shape[0]

    x = x.reshape(-1, input_size).astype(jnp.float32)
    B = x.shape[0]
    if B % tb != 0:                 # robust fallback: single tile
        tb = B
    grid = (B // tb,)

    resident2 = lambda i: (0, 0)       # weights: constant block -> single DMA
    resident3 = lambda i: (0, 0, 0)

    kernel = functools.partial(_gaussian_lstm_kernel,
                               n_layers=n_layers, hidden_size=H)

    out_shapes = (
        jax.ShapeDtypeStruct((B, out_size), jnp.float32),          # z
        jax.ShapeDtypeStruct((B, out_size), jnp.float32),          # mu
        jax.ShapeDtypeStruct((B, out_size), jnp.float32),          # logvar
        jax.ShapeDtypeStruct((n_layers, B, H), jnp.float32),       # h_new
        jax.ShapeDtypeStruct((n_layers, B, H), jnp.float32),       # c_new
    )

    in_specs = [
        pl.BlockSpec((tb, input_size), lambda i: (i, 0)),          # x
        pl.BlockSpec((input_size, H), resident2),                  # w_emb
        pl.BlockSpec((1, H), resident2),                           # b_emb
        pl.BlockSpec((n_layers, H, 4 * H), resident3),             # w_ih
        pl.BlockSpec((n_layers, H, 4 * H), resident3),             # w_hh
        pl.BlockSpec((n_layers, 1, 4 * H), resident3),             # b_gates
        pl.BlockSpec((H, out_size), resident2),                    # w_mu
        pl.BlockSpec((1, out_size), resident2),                    # b_mu
        pl.BlockSpec((H, out_size), resident2),                    # w_lv
        pl.BlockSpec((1, out_size), resident2),                    # b_lv
        pl.BlockSpec((n_layers, tb, H), lambda i: (0, i, 0)),      # h0
        pl.BlockSpec((n_layers, tb, H), lambda i: (0, i, 0)),      # c0
        pl.BlockSpec((tb, out_size), lambda i: (i, 0)),            # eps
    ]
    out_specs = (
        pl.BlockSpec((tb, out_size), lambda i: (i, 0)),            # z
        pl.BlockSpec((tb, out_size), lambda i: (i, 0)),            # mu
        pl.BlockSpec((tb, out_size), lambda i: (i, 0)),            # logvar
        pl.BlockSpec((n_layers, tb, H), lambda i: (0, i, 0)),      # h_new
        pl.BlockSpec((n_layers, tb, H), lambda i: (0, i, 0)),      # c_new
    )

    return pl.pallas_call(
        kernel,
        out_shape=out_shapes,
        grid_spec=pltpu.PrefetchScalarGridSpec(
            num_scalar_prefetch=0,
            grid=grid,
            in_specs=in_specs,
            out_specs=out_specs,
        ),
        compiler_params=pltpu.CompilerParams(
            dimension_semantics=("parallel",)),
    )(x, w_emb, b_emb, w_ih, w_hh, b_gates, w_mu, b_mu, w_lv, b_lv,
      h0, c0, eps)


# ---------------------------------------------------------------------------
# Pure-JAX reference (for a correctness sanity check)
# ---------------------------------------------------------------------------
def gaussian_lstm_reference(x, params, hidden, eps):
    w_emb, b_emb, w_ih, w_hh, b_gates, w_mu, b_mu, w_lv, b_lv = params
    h0, c0 = hidden
    H = w_emb.shape[1]
    n_layers = w_ih.shape[0]
    x = x.reshape(-1, w_emb.shape[0])
    h = x @ w_emb + b_emb
    h1, c1 = [], []
    for l in range(n_layers):
        gates = h @ w_ih[l] + h0[l] @ w_hh[l] + b_gates[l]
        i_g = jax.nn.sigmoid(gates[:, 0 * H:1 * H])
        f_g = jax.nn.sigmoid(gates[:, 1 * H:2 * H])
        g_g = jnp.tanh(gates[:, 2 * H:3 * H])
        o_g = jax.nn.sigmoid(gates[:, 3 * H:4 * H])
        c_new = f_g * c0[l] + i_g * g_g
        h_new = o_g * jnp.tanh(c_new)
        h1.append(h_new)
        c1.append(c_new)
        h = h_new
    mu = h @ w_mu + b_mu
    lv = h @ w_lv + b_lv
    z = eps * jnp.exp(0.5 * lv) + mu
    return z, mu, lv, jnp.stack(h1), jnp.stack(c1)


# ---------------------------------------------------------------------------
if __name__ == "__main__":
    # Small shapes consistent with the module (single timestep, flattened batch).
    B, input_size, hidden_size, output_size, n_layers = 16, 16, 32, 16, 2

    key = jax.random.PRNGKey(0)
    kx, keps, *kw = jax.random.split(key, 11)

    def nrm(k, shape, s=0.1):
        return s * jax.random.normal(k, shape, jnp.float32)

    # TODO(synk): weights are synthetic (scaled normal), not PyTorch's
    # uniform(-1/sqrt(H), 1/sqrt(H)) default init; math of the forward pass is
    # identical.
    params = (
        nrm(kw[0], (input_size, hidden_size)),                     # w_emb
        nrm(kw[1], (1, hidden_size)),                              # b_emb
        nrm(kw[2], (n_layers, hidden_size, 4 * hidden_size)),      # w_ih (i,f,g,o)
        nrm(kw[3], (n_layers, hidden_size, 4 * hidden_size)),      # w_hh
        nrm(kw[4], (n_layers, 1, 4 * hidden_size)),                # b_ih + b_hh
        nrm(kw[5], (hidden_size, output_size)),                    # w_mu
        nrm(kw[6], (1, output_size)),                              # b_mu
        nrm(kw[7], (hidden_size, output_size)),                    # w_logvar
        nrm(kw[8], (1, output_size)),                              # b_logvar
    )

    x = jax.random.normal(kx, (B, input_size), jnp.float32)
    # TODO(synk): reparameterization noise is drawn host-side (deterministic
    # PRNGKey) and passed in, rather than with the in-kernel TPU PRNG.
    eps = jax.random.normal(keps, (B, output_size), jnp.float32)

    # init_hidden(): zeros, threaded functionally instead of module state.
    h0 = jnp.zeros((n_layers, B, hidden_size), jnp.float32)
    c0 = jnp.zeros((n_layers, B, hidden_size), jnp.float32)

    fwd = jax.jit(gaussian_lstm_forward)
    z, mu, logvar, h1, c1 = fwd(x, params, (h0, c0), eps)
    jax.block_until_ready((z, mu, logvar, h1, c1))

    z_r, mu_r, lv_r, h1_r, c1_r = gaussian_lstm_reference(
        x, params, (h0, c0), eps)

    assert z.shape == (B, output_size) and mu.shape == (B, output_size)
    assert logvar.shape == (B, output_size)
    assert h1.shape == (n_layers, B, hidden_size)
    for got, ref in ((z, z_r), (mu, mu_r), (logvar, lv_r),
                     (h1, h1_r), (c1, c1_r)):
        assert bool(jnp.all(jnp.isfinite(got)))
        assert float(jnp.max(jnp.abs(got - ref))) < 5e-2

    print("KERNEL_OK")
</pallas_src>

<mosaic_0001>
module attributes {stable_mosaic.version = 11 : i64} {
  func.func @_gaussian_lstm_kernel(%arg0: i32, %arg1: memref<8x16xf32, #tpu.memory_space<vmem>>, %arg2: memref<16x32xf32, #tpu.memory_space<vmem>>, %arg3: memref<1x32xf32, #tpu.memory_space<vmem>>, %arg4: memref<2x32x128xf32, #tpu.memory_space<vmem>>, %arg5: memref<2x32x128xf32, #tpu.memory_space<vmem>>, %arg6: memref<2x1x128xf32, #tpu.memory_space<vmem>>, %arg7: memref<32x16xf32, #tpu.memory_space<vmem>>, %arg8: memref<1x16xf32, #tpu.memory_space<vmem>>, %arg9: memref<32x16xf32, #tpu.memory_space<vmem>>, %arg10: memref<1x16xf32, #tpu.memory_space<vmem>>, %arg11: memref<2x8x32xf32, #tpu.memory_space<vmem>>, %arg12: memref<2x8x32xf32, #tpu.memory_space<vmem>>, %arg13: memref<8x16xf32, #tpu.memory_space<vmem>>, %arg14: memref<8x16xf32, #tpu.memory_space<vmem>>, %arg15: memref<8x16xf32, #tpu.memory_space<vmem>>, %arg16: memref<8x16xf32, #tpu.memory_space<vmem>>, %arg17: memref<2x8x32xf32, #tpu.memory_space<vmem>>, %arg18: memref<2x8x32xf32, #tpu.memory_space<vmem>>) attributes {dimension_semantics = [#tpu.dimension_semantics<parallel>], iteration_bounds = array<i64: 2>, scalar_prefetch = 0 : i64, scratch_operands = 0 : i64, tpu.core_type = #tpu.core_type<tc>, window_params = [{transform_indices = @transform_0, window_bounds = array<i64: 8, 16>}, {pipeline_mode = #tpu.pipeline_mode<synchronous>, transform_indices = @transform_1, window_bounds = array<i64: 16, 32>}, {pipeline_mode = #tpu.pipeline_mode<synchronous>, transform_indices = @transform_2, window_bounds = array<i64: 1, 32>}, {pipeline_mode = #tpu.pipeline_mode<synchronous>, transform_indices = @transform_3, window_bounds = array<i64: 2, 32, 128>}, {pipeline_mode = #tpu.pipeline_mode<synchronous>, transform_indices = @transform_4, window_bounds = array<i64: 2, 32, 128>}, {pipeline_mode = #tpu.pipeline_mode<synchronous>, transform_indices = @transform_5, window_bounds = array<i64: 2, 1, 128>}, {pipeline_mode = #tpu.pipeline_mode<synchronous>, transform_indices = @transform_6, window_bounds = array<i64: 32, 16>}, {pipeline_mode = #tpu.pipeline_mode<synchronous>, transform_indices = @transform_7, window_bounds = array<i64: 1, 16>}, {pipeline_mode = #tpu.pipeline_mode<synchronous>, transform_indices = @transform_8, window_bounds = array<i64: 32, 16>}, {pipeline_mode = #tpu.pipeline_mode<synchronous>, transform_indices = @transform_9, window_bounds = array<i64: 1, 16>}, {transform_indices = @transform_10, window_bounds = array<i64: 2, 8, 32>}, {transform_indices = @transform_11, window_bounds = array<i64: 2, 8, 32>}, {transform_indices = @transform_12, window_bounds = array<i64: 8, 16>}, {transform_indices = @transform_13, window_bounds = array<i64: 8, 16>}, {transform_indices = @transform_14, window_bounds = array<i64: 8, 16>}, {transform_indices = @transform_15, window_bounds = array<i64: 8, 16>}, {transform_indices = @transform_16, window_bounds = array<i64: 2, 8, 32>}, {transform_indices = @transform_17, window_bounds = array<i64: 2, 8, 32>}]} {
    %c0 = arith.constant 0 : index
    %c0_0 = arith.constant 0 : index
    %0 = vector.load %arg1[%c0, %c0_0] : memref<8x16xf32, #tpu.memory_space<vmem>>, vector<8x16xf32>
    %c0_1 = arith.constant 0 : index
    %c0_2 = arith.constant 0 : index
    %1 = vector.load %arg2[%c0_1, %c0_2] : memref<16x32xf32, #tpu.memory_space<vmem>>, vector<16x32xf32>
    %cst = arith.constant dense<0.000000e+00> : vector<8x32xf32>
    %2 = tpu.matmul %0, %1, %cst {dimension_numbers = #tpu.dot_dimension_numbers<[1], [0], [0], [1], [0, 0, 1, 1], [], []>} : vector<8x16xf32>, vector<16x32xf32>, vector<8x32xf32> -> vector<8x32xf32>
    %c0_3 = arith.constant 0 : index
    %c0_4 = arith.constant 0 : index
    %3 = vector.load %arg3[%c0_3, %c0_4] : memref<1x32xf32, #tpu.memory_space<vmem>>, vector<1x32xf32>
    %4 = vector.broadcast %3 : vector<1x32xf32> to vector<8x32xf32>
    %5 = arith.addf %2, %4 : vector<8x32xf32>
    %c0_5 = arith.constant 0 : index
    %c0_6 = arith.constant 0 : index
    %c0_7 = arith.constant 0 : index
    %6 = vector.load %arg11[%c0_5, %c0_6, %c0_7] : memref<2x8x32xf32, #tpu.memory_space<vmem>>, vector<1x8x32xf32>
    %7 = vector.shape_cast %6 : vector<1x8x32xf32> to vector<8x32xf32>
    %c0_8 = arith.constant 0 : index
    %c0_9 = arith.constant 0 : index
    %c0_10 = arith.constant 0 : index
    %8 = vector.load %arg12[%c0_8, %c0_9, %c0_10] : memref<2x8x32xf32, #tpu.memory_space<vmem>>, vector<1x8x32xf32>
    %9 = vector.shape_cast %8 : vector<1x8x32xf32> to vector<8x32xf32>
    %c0_11 = arith.constant 0 : index
    %c0_12 = arith.constant 0 : index
    %c0_13 = arith.constant 0 : index
    %10 = vector.load %arg4[%c0_11, %c0_12, %c0_13] : memref<2x32x128xf32, #tpu.memory_space<vmem>>, vector<1x32x128xf32>
    %11 = vector.shape_cast %10 : vector<1x32x128xf32> to vector<32x128xf32>
    %cst_14 = arith.constant dense<0.000000e+00> : vector<8x128xf32>
    %12 = tpu.matmul %5, %11, %cst_14 {dimension_numbers = #tpu.dot_dimension_numbers<[1], [0], [0], [1], [0, 0, 1, 1], [], []>} : vector<8x32xf32>, vector<32x128xf32>, vector<8x128xf32> -> vector<8x128xf32>
    %c0_15 = arith.constant 0 : index
    %c0_16 = arith.constant 0 : index
    %c0_17 = arith.constant 0 : index
    %13 = vector.load %arg5[%c0_15, %c0_16, %c0_17] : memref<2x32x128xf32, #tpu.memory_space<vmem>>, vector<1x32x128xf32>
    %14 = vector.shape_cast %13 : vector<1x32x128xf32> to vector<32x128xf32>
    %cst_18 = arith.constant dense<0.000000e+00> : vector<8x128xf32>
    %15 = tpu.matmul %7, %14, %cst_18 {dimension_numbers = #tpu.dot_dimension_numbers<[1], [0], [0], [1], [0, 0, 1, 1], [], []>} : vector<8x32xf32>, vector<32x128xf32>, vector<8x128xf32> -> vector<8x128xf32>
    %16 = arith.addf %12, %15 : vector<8x128xf32>
    %c0_19 = arith.constant 0 : index
    %c0_20 = arith.constant 0 : index
    %c0_21 = arith.constant 0 : index
    %17 = vector.load %arg6[%c0_19, %c0_20, %c0_21] : memref<2x1x128xf32, #tpu.memory_space<vmem>>, vector<1x1x128xf32>
    %18 = vector.shape_cast %17 : vector<1x1x128xf32> to vector<1x128xf32>
    %19 = vector.broadcast %18 : vector<1x128xf32> to vector<8x128xf32>
    %20 = arith.addf %16, %19 : vector<8x128xf32>
    %21 = vector.extract_strided_slice %20 {offsets = [0, 0], sizes = [8, 32], strides = [1, 1]} : vector<8x128xf32> to vector<8x32xf32>
    %22 = arith.negf %21 : vector<8x32xf32>
    %23 = math.exp %22 : vector<8x32xf32>
    %cst_22 = arith.constant 1.000000e+00 : f32
    %24 = vector.broadcast %cst_22 : f32 to vector<8x32xf32>
    %25 = arith.addf %24, %23 : vector<8x32xf32>
    %26 = arith.divf %24, %25 : vector<8x32xf32>
    %27 = vector.extract_strided_slice %20 {offsets = [0, 32], sizes = [8, 32], strides = [1, 1]} : vector<8x128xf32> to vector<8x32xf32>
    %28 = arith.negf %27 : vector<8x32xf32>
    %29 = math.exp %28 : vector<8x32xf32>
    %cst_23 = arith.constant 1.000000e+00 : f32
    %30 = vector.broadcast %cst_23 : f32 to vector<8x32xf32>
    %31 = arith.addf %30, %29 : vector<8x32xf32>
    %32 = arith.divf %30, %31 : vector<8x32xf32>
    %33 = vector.extract_strided_slice %20 {offsets = [0, 64], sizes = [8, 32], strides = [1, 1]} : vector<8x128xf32> to vector<8x32xf32>
    %34 = math.tanh %33 : vector<8x32xf32>
    %35 = vector.extract_strided_slice %20 {offsets = [0, 96], sizes = [8, 32], strides = [1, 1]} : vector<8x128xf32> to vector<8x32xf32>
    %36 = arith.negf %35 : vector<8x32xf32>
    %37 = math.exp %36 : vector<8x32xf32>
    %cst_24 = arith.constant 1.000000e+00 : f32
    %38 = vector.broadcast %cst_24 : f32 to vector<8x32xf32>
    %39 = arith.addf %38, %37 : vector<8x32xf32>
    %40 = arith.divf %38, %39 : vector<8x32xf32>
    %41 = arith.mulf %32, %9 : vector<8x32xf32>
    %42 = arith.mulf %26, %34 : vector<8x32xf32>
    %43 = arith.addf %41, %42 : vector<8x32xf32>
    %44 = math.tanh %43 : vector<8x32xf32>
    %45 = arith.mulf %40, %44 : vector<8x32xf32>
    %c0_25 = arith.constant 0 : index
    %c0_26 = arith.constant 0 : index
    %c0_27 = arith.constant 0 : index
    %46 = vector.load %arg17[%c0_25, %c0_26, %c0_27] : memref<2x8x32xf32, #tpu.memory_space<vmem>>, vector<1x8x32xf32>
    %47 = vector.shape_cast %46 : vector<1x8x32xf32> to vector<8x32xf32>
    %48 = vector.shape_cast %45 : vector<8x32xf32> to vector<1x8x32xf32>
    tpu.vector_store %arg17[%c0_25, %c0_26, %c0_27], %48 {strides = array<i32>} : memref<2x8x32xf32, #tpu.memory_space<vmem>>, vector<1x8x32xf32>,
    %c0_28 = arith.constant 0 : index
    %c0_29 = arith.constant 0 : index
    %c0_30 = arith.constant 0 : index
    %49 = vector.load %arg18[%c0_28, %c0_29, %c0_30] : memref<2x8x32xf32, #tpu.memory_space<vmem>>, vector<1x8x32xf32>
    %50 = vector.shape_cast %49 : vector<1x8x32xf32> to vector<8x32xf32>
    %51 = vector.shape_cast %43 : vector<8x32xf32> to vector<1x8x32xf32>
    tpu.vector_store %arg18[%c0_28, %c0_29, %c0_30], %51 {strides = array<i32>} : memref<2x8x32xf32, #tpu.memory_space<vmem>>, vector<1x8x32xf32>,
    %c1 = arith.constant 1 : index
    %c0_31 = arith.constant 0 : index
    %c0_32 = arith.constant 0 : index
    %52 = vector.load %arg11[%c1, %c0_31, %c0_32] : memref<2x8x32xf32, #tpu.memory_space<vmem>>, vector<1x8x32xf32>
    %53 = vector.shape_cast %52 : vector<1x8x32xf32> to vector<8x32xf32>
    %c1_33 = arith.constant 1 : index
    %c0_34 = arith.constant 0 : index
    %c0_35 = arith.constant 0 : index
    %54 = vector.load %arg12[%c1_33, %c0_34, %c0_35] : memref<2x8x32xf32, #tpu.memory_space<vmem>>, vector<1x8x32xf32>
    %55 = vector.shape_cast %54 : vector<1x8x32xf32> to vector<8x32xf32>
    %c1_36 = arith.constant 1 : index
    %c0_37 = arith.constant 0 : index
    %c0_38 = arith.constant 0 : index
    %56 = vector.load %arg4[%c1_36, %c0_37, %c0_38] : memref<2x32x128xf32, #tpu.memory_space<vmem>>, vector<1x32x128xf32>
    %57 = vector.shape_cast %56 : vector<1x32x128xf32> to vector<32x128xf32>
    %cst_39 = arith.constant dense<0.000000e+00> : vector<8x128xf32>
    %58 = tpu.matmul %45, %57, %cst_39 {dimension_numbers = #tpu.dot_dimension_numbers<[1], [0], [0], [1], [0, 0, 1, 1], [], []>} : vector<8x32xf32>, vector<32x128xf32>, vector<8x128xf32> -> vector<8x128xf32>
    %c1_40 = arith.constant 1 : index
    %c0_41 = arith.constant 0 : index
    %c0_42 = arith.constant 0 : index
    %59 = vector.load %arg5[%c1_40, %c0_41, %c0_42] : memref<2x32x128xf32, #tpu.memory_space<vmem>>, vector<1x32x128xf32>
    %60 = vector.shape_cast %59 : vector<1x32x128xf32> to vector<32x128xf32>
    %cst_43 = arith.constant dense<0.000000e+00> : vector<8x128xf32>
    %61 = tpu.matmul %53, %60, %cst_43 {dimension_numbers = #tpu.dot_dimension_numbers<[1], [0], [0], [1], [0, 0, 1, 1], [], []>} : vector<8x32xf32>, vector<32x128xf32>, vector<8x128xf32> -> vector<8x128xf32>
    %62 = arith.addf %58, %61 : vector<8x128xf32>
    %c1_44 = arith.constant 1 : index
    %c0_45 = arith.constant 0 : index
    %c0_46 = arith.constant 0 : index
    %63 = vector.load %arg6[%c1_44, %c0_45, %c0_46] : memref<2x1x128xf32, #tpu.memory_space<vmem>>, vector<1x1x128xf32>
    %64 = vector.shape_cast %63 : vector<1x1x128xf32> to vector<1x128xf32>
    %65 = vector.broadcast %64 : vector<1x128xf32> to vector<8x128xf32>
    %66 = arith.addf %62, %65 : vector<8x128xf32>
    %67 = vector.extract_strided_slice %66 {offsets = [0, 0], sizes = [8, 32], strides = [1, 1]} : vector<8x128xf32> to vector<8x32xf32>
    %68 = arith.negf %67 : vector<8x32xf32>
    %69 = math.exp %68 : vector<8x32xf32>
    %cst_47 = arith.constant 1.000000e+00 : f32
    %70 = vector.broadcast %cst_47 : f32 to vector<8x32xf32>
    %71 = arith.addf %70, %69 : vector<8x32xf32>
    %72 = arith.divf %70, %71 : vector<8x32xf32>
    %73 = vector.extract_strided_slice %66 {offsets = [0, 32], sizes = [8, 32], strides = [1, 1]} : vector<8x128xf32> to vector<8x32xf32>
    %74 = arith.negf %73 : vector<8x32xf32>
    %75 = math.exp %74 : vector<8x32xf32>
    %cst_48 = arith.constant 1.000000e+00 : f32
    %76 = vector.broadcast %cst_48 : f32 to vector<8x32xf32>
    %77 = arith.addf %76, %75 : vector<8x32xf32>
    %78 = arith.divf %76, %77 : vector<8x32xf32>
    %79 = vector.extract_strided_slice %66 {offsets = [0, 64], sizes = [8, 32], strides = [1, 1]} : vector<8x128xf32> to vector<8x32xf32>
    %80 = math.tanh %79 : vector<8x32xf32>
    %81 = vector.extract_strided_slice %66 {offsets = [0, 96], sizes = [8, 32], strides = [1, 1]} : vector<8x128xf32> to vector<8x32xf32>
    %82 = arith.negf %81 : vector<8x32xf32>
    %83 = math.exp %82 : vector<8x32xf32>
    %cst_49 = arith.constant 1.000000e+00 : f32
    %84 = vector.broadcast %cst_49 : f32 to vector<8x32xf32>
    %85 = arith.addf %84, %83 : vector<8x32xf32>
    %86 = arith.divf %84, %85 : vector<8x32xf32>
    %87 = arith.mulf %78, %55 : vector<8x32xf32>
    %88 = arith.mulf %72, %80 : vector<8x32xf32>
    %89 = arith.addf %87, %88 : vector<8x32xf32>
    %90 = math.tanh %89 : vector<8x32xf32>
    %91 = arith.mulf %86, %90 : vector<8x32xf32>
    %c1_50 = arith.constant 1 : index
    %c0_51 = arith.constant 0 : index
    %c0_52 = arith.constant 0 : index
    %92 = vector.load %arg17[%c1_50, %c0_51, %c0_52] : memref<2x8x32xf32, #tpu.memory_space<vmem>>, vector<1x8x32xf32>
    %93 = vector.shape_cast %92 : vector<1x8x32xf32> to vector<8x32xf32>
    %94 = vector.shape_cast %91 : vector<8x32xf32> to vector<1x8x32xf32>
    tpu.vector_store %arg17[%c1_50, %c0_51, %c0_52], %94 {strides = array<i32>} : memref<2x8x32xf32, #tpu.memory_space<vmem>>, vector<1x8x32xf32>,
    %c1_53 = arith.constant 1 : index
    %c0_54 = arith.constant 0 : index
    %c0_55 = arith.constant 0 : index
    %95 = vector.load %arg18[%c1_53, %c0_54, %c0_55] : memref<2x8x32xf32, #tpu.memory_space<vmem>>, vector<1x8x32xf32>
    %96 = vector.shape_cast %95 : vector<1x8x32xf32> to vector<8x32xf32>
    %97 = vector.shape_cast %89 : vector<8x32xf32> to vector<1x8x32xf32>
    tpu.vector_store %arg18[%c1_53, %c0_54, %c0_55], %97 {strides = array<i32>} : memref<2x8x32xf32, #tpu.memory_space<vmem>>, vector<1x8x32xf32>,
    %c0_56 = arith.constant 0 : index
    %c0_57 = arith.constant 0 : index
    %98 = vector.load %arg7[%c0_56, %c0_57] : memref<32x16xf32, #tpu.memory_space<vmem>>, vector<32x16xf32>
    %cst_58 = arith.constant dense<0.000000e+00> : vector<8x16xf32>
    %99 = tpu.matmul %91, %98, %cst_58 {dimension_numbers = #tpu.dot_dimension_numbers<[1], [0], [0], [1], [0, 0, 1, 1], [], []>} : vector<8x32xf32>, vector<32x16xf32>, vector<8x16xf32> -> vector<8x16xf32>
    %c0_59 = arith.constant 0 : index
    %c0_60 = arith.constant 0 : index
    %100 = vector.load %arg8[%c0_59, %c0_60] : memref<1x16xf32, #tpu.memory_space<vmem>>, vector<1x16xf32>
    %101 = vector.broadcast %100 : vector<1x16xf32> to vector<8x16xf32>
    %102 = arith.addf %99, %101 : vector<8x16xf32>
    %c0_61 = arith.constant 0 : index
    %c0_62 = arith.constant 0 : index
    %103 = vector.load %arg9[%c0_61, %c0_62] : memref<32x16xf32, #tpu.memory_space<vmem>>, vector<32x16xf32>
    %cst_63 = arith.constant dense<0.000000e+00> : vector<8x16xf32>
    %104 = tpu.matmul %91, %103, %cst_63 {dimension_numbers = #tpu.dot_dimension_numbers<[1], [0], [0], [1], [0, 0, 1, 1], [], []>} : vector<8x32xf32>, vector<32x16xf32>, vector<8x16xf32> -> vector<8x16xf32>
    %c0_64 = arith.constant 0 : index
    %c0_65 = arith.constant 0 : index
    %105 = vector.load %arg10[%c0_64, %c0_65] : memref<1x16xf32, #tpu.memory_space<vmem>>, vector<1x16xf32>
    %106 = vector.broadcast %105 : vector<1x16xf32> to vector<8x16xf32>
    %107 = arith.addf %104, %106 : vector<8x16xf32>
    %c0_66 = arith.constant 0 : index
    %c0_67 = arith.constant 0 : index
    %108 = vector.load %arg13[%c0_66, %c0_67] : memref<8x16xf32, #tpu.memory_space<vmem>>, vector<8x16xf32>
    %cst_68 = arith.constant 5.000000e-01 : f32
    %109 = vector.broadcast %cst_68 : f32 to vector<8x16xf32>
    %110 = arith.mulf %109, %107 : vector<8x16xf32>
    %111 = math.exp %110 : vector<8x16xf32>
    %112 = arith.mulf %108, %111 : vector<8x16xf32>
    %113 = arith.addf %112, %102 : vector<8x16xf32>
    %c0_69 = arith.constant 0 : index
    %c0_70 = arith.constant 0 : index
    %114 = vector.load %arg14[%c0_69, %c0_70] : memref<8x16xf32, #tpu.memory_space<vmem>>, vector<8x16xf32>
    tpu.vector_store %arg14[%c0_69, %c0_70], %113 {strides = array<i32>} : memref<8x16xf32, #tpu.memory_space<vmem>>, vector<8x16xf32>,
    %c0_71 = arith.constant 0 : index
    %c0_72 = arith.constant 0 : index
    %115 = vector.load %arg15[%c0_71, %c0_72] : memref<8x16xf32, #tpu.memory_space<vmem>>, vector<8x16xf32>
    tpu.vector_store %arg15[%c0_71, %c0_72], %102 {strides = array<i32>} : memref<8x16xf32, #tpu.memory_space<vmem>>, vector<8x16xf32>,
    %c0_73 = arith.constant 0 : index
    %c0_74 = arith.constant 0 : index
    %116 = vector.load %arg16[%c0_73, %c0_74] : memref<8x16xf32, #tpu.memory_space<vmem>>, vector<8x16xf32>
    tpu.vector_store %arg16[%c0_73, %c0_74], %107 {strides = array<i32>} : memref<8x16xf32, #tpu.memory_space<vmem>>, vector<8x16xf32>,
    return
  }
  func.func @transform_0(%arg0: i32) -> (i32, i32) {
    %c0_i32 = arith.constant 0 : i32
    %c0_i32_0 = arith.constant 0 : i32
    return %arg0, %c0_i32 : i32, i32
  }
  func.func @transform_1(%arg0: i32) -> (i32, i32) {
    %c0_i32 = arith.constant 0 : i32
    %c0_i32_0 = arith.constant 0 : i32
    %c0_i32_1 = arith.constant 0 : i32
    return %c0_i32, %c0_i32_0 : i32, i32
  }
  func.func @transform_2(%arg0: i32) -> (i32, i32) {
    %c0_i32 = arith.constant 0 : i32
    %c0_i32_0 = arith.constant 0 : i32
    %c0_i32_1 = arith.constant 0 : i32
    return %c0_i32, %c0_i32_0 : i32, i32
  }
  func.func @transform_3(%arg0: i32) -> (i32, i32, i32) {
    %c0_i32 = arith.constant 0 : i32
    %c0_i32_0 = arith.constant 0 : i32
    %c0_i32_1 = arith.constant 0 : i32
    %c0_i32_2 = arith.constant 0 : i32
    return %c0_i32, %c0_i32_0, %c0_i32_1 : i32, i32, i32
  }
  func.func @transform_4(%arg0: i32) -> (i32, i32, i32) {
    %c0_i32 = arith.constant 0 : i32
    %c0_i32_0 = arith.constant 0 : i32
    %c0_i32_1 = arith.constant 0 : i32
    %c0_i32_2 = arith.constant 0 : i32
    return %c0_i32, %c0_i32_0, %c0_i32_1 : i32, i32, i32
  }
  func.func @transform_5(%arg0: i32) -> (i32, i32, i32) {
    %c0_i32 = arith.constant 0 : i32
    %c0_i32_0 = arith.constant 0 : i32
    %c0_i32_1 = arith.constant 0 : i32
    %c0_i32_2 = arith.constant 0 : i32
    return %c0_i32, %c0_i32_0, %c0_i32_1 : i32, i32, i32
  }
  func.func @transform_6(%arg0: i32) -> (i32, i32) {
    %c0_i32 = arith.constant 0 : i32
    %c0_i32_0 = arith.constant 0 : i32
    %c0_i32_1 = arith.constant 0 : i32
    return %c0_i32, %c0_i32_0 : i32, i32
  }
  func.func @transform_7(%arg0: i32) -> (i32, i32) {
    %c0_i32 = arith.constant 0 : i32
    %c0_i32_0 = arith.constant 0 : i32
    %c0_i32_1 = arith.constant 0 : i32
    return %c0_i32, %c0_i32_0 : i32, i32
  }
  func.func @transform_8(%arg0: i32) -> (i32, i32) {
    %c0_i32 = arith.constant 0 : i32
    %c0_i32_0 = arith.constant 0 : i32
    %c0_i32_1 = arith.constant 0 : i32
    return %c0_i32, %c0_i32_0 : i32, i32
  }
  func.func @transform_9(%arg0: i32) -> (i32, i32) {
    %c0_i32 = arith.constant 0 : i32
    %c0_i32_0 = arith.constant 0 : i32
    %c0_i32_1 = arith.constant 0 : i32
    return %c0_i32, %c0_i32_0 : i32, i32
  }
  func.func @transform_10(%arg0: i32) -> (i32, i32, i32) {
    %c0_i32 = arith.constant 0 : i32
    %c0_i32_0 = arith.constant 0 : i32
    %c0_i32_1 = arith.constant 0 : i32
    return %c0_i32, %arg0, %c0_i32_0 : i32, i32, i32
  }
  func.func @transform_11(%arg0: i32) -> (i32, i32, i32) {
    %c0_i32 = arith.constant 0 : i32
    %c0_i32_0 = arith.constant 0 : i32
    %c0_i32_1 = arith.constant 0 : i32
    return %c0_i32, %arg0, %c0_i32_0 : i32, i32, i32
  }
  func.func @transform_12(%arg0: i32) -> (i32, i32) {
    %c0_i32 = arith.constant 0 : i32
    %c0_i32_0 = arith.constant 0 : i32
    return %arg0, %c0_i32 : i32, i32
  }
  func.func @transform_13(%arg0: i32) -> (i32, i32) {
    %c0_i32 = arith.constant 0 : i32
    %c0_i32_0 = arith.constant 0 : i32
    return %arg0, %c0_i32 : i32, i32
  }
  func.func @transform_14(%arg0: i32) -> (i32, i32) {
    %c0_i32 = arith.constant 0 : i32
    %c0_i32_0 = arith.constant 0 : i32
    return %arg0, %c0_i32 : i32, i32
  }
  func.func @transform_15(%arg0: i32) -> (i32, i32) {
    %c0_i32 = arith.constant 0 : i32
    %c0_i32_0 = arith.constant 0 : i32
    return %arg0, %c0_i32 : i32, i32
  }
  func.func @transform_16(%arg0: i32) -> (i32, i32, i32) {
    %c0_i32 = arith.constant 0 : i32
    %c0_i32_0 = arith.constant 0 : i32
    %c0_i32_1 = arith.constant 0 : i32
    return %c0_i32, %arg0, %c0_i32_0 : i32, i32, i32
  }
  func.func @transform_17(%arg0: i32) -> (i32, i32, i32) {
    %c0_i32 = arith.constant 0 : i32
    %c0_i32_0 = arith.constant 0 : i32
    %c0_i32_1 = arith.constant 0 : i32
    return %c0_i32, %arg0, %c0_i32_0 : i32, i32, i32
  }
}

</mosaic_0001>

<llo_original>
// kernel: gaussian_lstm_forward.1
$region0: #{gaussian_lstm_forward.1}
  #allocation0 [shape = 'u32[]', space=smem, size = 0x4, offset = 0x4, fixed_abs, tag = 'smem constant byte address 0x4 - core index']
  #allocation1 [shape = 'u32[72,128]{1,0:T(1,128)}', space=vmem, size = 0x9000, scoped, tag = 'internal scratch']
  %s0 = inlined_call_operand.vmem [shape: f32[16,16], index: 0, kind: input, shape index: {}]
  %s1 = inlined_call_operand.hbm [shape: f32[16,32], index: 1, kind: input, shape index: {}]
  %s2 = inlined_call_operand.vmem [shape: f32[1,32], index: 2, kind: input, shape index: {}]
  %s3 = inlined_call_operand.vmem [shape: f32[2,32,128], index: 3, kind: input, shape index: {}]
  %s4 = inlined_call_operand.hbm [shape: f32[2,32,128], index: 4, kind: input, shape index: {}]
  %s5 = inlined_call_operand.vmem [shape: f32[2,1,128], index: 5, kind: input, shape index: {}]
  %s6 = inlined_call_operand.vmem [shape: f32[32,16], index: 6, kind: input, shape index: {}]
  %s7 = inlined_call_operand.vmem [shape: f32[1,16], index: 7, kind: input, shape index: {}]
  %s8 = inlined_call_operand.vmem [shape: f32[32,16], index: 8, kind: input, shape index: {}]
  %s9 = inlined_call_operand.vmem [shape: f32[1,16], index: 9, kind: input, shape index: {}]
  %s10 = inlined_call_operand.hbm [shape: f32[2,16,32], index: 10, kind: input, shape index: {}]
  %s11 = inlined_call_operand.hbm [shape: f32[2,16,32], index: 11, kind: input, shape index: {}]
  %s12 = inlined_call_operand.hbm [shape: f32[16,16], index: 12, kind: input, shape index: {}]
  %s13 = inlined_call_operand.hbm [shape: f32[16,16], index: 13, kind: output, shape index: {0}]
  %s14 = inlined_call_operand.hbm [shape: f32[16,16], index: 14, kind: output, shape index: {1}]
  %s15 = inlined_call_operand.hbm [shape: f32[16,16], index: 15, kind: output, shape index: {2}]
  %s16 = inlined_call_operand.hbm [shape: f32[2,16,32], index: 16, kind: output, shape index: {3}]
  %s17 = inlined_call_operand.hbm [shape: f32[2,16,32], index: 17, kind: output, shape index: {4}]
  %18 = xla_tuple %s13, %s14, %s15, %s16, %s17
  %s19 = sld [smem:[#allocation0]]
  $region137: #{gaussian_lstm_forward.1} parent=0
    _
  %s21 = ssub.s32 1, %s19
  %s22 = scalar_select 0, %s21, %s19
  $region1: #{gaussian_lstm_forward.1} parent=0
    #allocation2 [shape = 'u8[8192]{0}', space=vmem, size = 0x2000, scoped, tag = 'input window, operand 1, single buffered']
    #allocation3 [shape = 's32[2]{0}', space=sflag, size = 0x8, scoped, tag = 'scoped memory for gaussian_lstm_forward.1']
    #allocation4 [shape = 's32[2]{0}', space=sflag, size = 0x8, scoped, tag = 'scoped memory for gaussian_lstm_forward.1']
    #allocation5 [shape = 'u8[32768]{0}', space=vmem, size = 0x8000, scoped, tag = 'input window, operand 4, single buffered']
    #allocation6 [shape = 's32[1]{0}', space=sflag, size = 0x4, scoped, tag = 'scoped memory for gaussian_lstm_forward.1']
    #allocation7 [shape = 'u8[16384]{0}', space=vmem, size = 0x4000, scoped, tag = 'input window, operand 10']
    #allocation8 [shape = 'u8[16384]{0}', space=vmem, size = 0x4000, scoped, tag = 'input window, operand 11']
    #allocation9 [shape = 'u8[8192]{0}', space=vmem, size = 0x2000, scoped, tag = 'input window, operand 12']
    #allocation10 [shape = 'u8[8192]{0}', space=vmem, size = 0x2000, scoped, tag = 'output window, operand 0']
    #allocation11 [shape = 'u8[8192]{0}', space=vmem, size = 0x2000, scoped, tag = 'output window, operand 1']
    #allocation12 [shape = 's32[2]{0}', space=sflag, size = 0x8, scoped, tag = 'scoped memory for gaussian_lstm_forward.1']
    #allocation13 [shape = 'u8[8192]{0}', space=vmem, size = 0x2000, scoped, tag = 'output window, operand 2']
    #allocation14 [shape = 'u8[16384]{0}', space=vmem, size = 0x4000, scoped, tag = 'output window, operand 3']
    #allocation15 [shape = 's32[2]{0}', space=sflag, size = 0x8, scoped, tag = 'scoped memory for gaussian_lstm_forward.1']
    #allocation16 [shape = 'u8[16384]{0}', space=vmem, size = 0x4000, scoped, tag = 'output window, operand 4']
    %23 = vsyncpa [#allocation3], 0
    %24 = vsyncpa [#allocation6], 0
    %25 = vsyncpa [#allocation4], 0
    %s26 = scalar_lea.sflag [#allocation4], 1
    %27 = vsyncpa %s26, 0
    %28 = vsyncpa [#allocation12], 0
    %s29 = scalar_lea.sflag [#allocation12], 1
    %30 = vsyncpa %s29, 0
    %31 = vsyncpa [#allocation15], 0
    %s32 = scalar_lea.sflag [#allocation15], 1
    %33 = vsyncpa %s32, 0
    loop: start=0, step=1, limit=4
    $region2: #{gaussian_lstm_forward.1} parent=1 // loop_pre_header
      _
    $region3: #{gaussian_lstm_forward.1} parent=1 // loop_header
      %s35 = sphi 0, %s39
      %p36 = scmp.ge.s32.totalorder %s35, 4
      %s45 = sphi 0, %s47
      %s48 = sphi 0, %s45
      %s49 = sphi 0, %s48
      %s65 = sphi 0, %s49
      %s69 = sphi 0, %s69
      %s71 = sphi 0, %s69
      %s72 = sphi 0, %s71
      %s86 = sphi 0, %s72
      %s90 = sphi 0, %s90
      %s92 = sphi 0, %s90
      %s93 = sphi 0, %s92
      %s107 = sphi 0, %s93
      %s111 = sphi 0, %s111
      %s113 = sphi 0, %s111
      %s114 = sphi 0, %s113
      %s128 = sphi 0, %s114
      %s132 = sphi 0, %s132
      %s134 = sphi 0, %s132
      %s135 = sphi 0, %s134
      %s149 = sphi 0, %s135
      %s153 = sphi 0, %s153
      %s155 = sphi 0, %s153
      %s156 = sphi 0, %s155
      %s170 = sphi 0, %s156
      %s174 = sphi 0, %s174
      %s176 = sphi 0, %s174
      %s177 = sphi 0, %s176
      %s191 = sphi 0, %s177
      %s195 = sphi 0, %s195
      %s197 = sphi 0, %s195
      %s198 = sphi 0, %s197
      %s212 = sphi 0, %s198
      %s216 = sphi 0, %s216
      %s218 = sphi 0, %s216
      %s219 = sphi 0, %s218
      %s233 = sphi 0, %s219
      %s237 = sphi 0, %s237
      %s239 = sphi 0, %s237
      %s240 = sphi 0, %s239
      %s254 = sphi 0, %s240
      %s260 = sphi 0, %s262
      %s263 = sphi 0, %s260
      %s264 = sphi 0, %s263
      %s280 = sphi 0, %s264
      %s286 = sphi 0, %s288
      %s289 = sphi 0, %s286
      %s290 = sphi 0, %s289
      %s306 = sphi 0, %s290
      %s312 = sphi 0, %s314
      %s315 = sphi 0, %s312
      %s316 = sphi 0, %s315
      %s332 = sphi 0, %s316
      %s338 = sphi 0, %s340
      %s341 = sphi 0, %s338
      %s342 = sphi 0, %s341
      %s358 = sphi 0, %s342
      %s364 = sphi 0, %s366
      %s367 = sphi 0, %s364
      %s368 = sphi 0, %s367
      %s384 = sphi 0, %s368
      %s390 = sphi 0, %s392
      %s393 = sphi 0, %s390
      %s394 = sphi 0, %s393
      %s410 = sphi 0, %s394
      %s416 = sphi 0, %s418
      %s419 = sphi 0, %s416
      %s420 = sphi 0, %s419
      %s436 = sphi 0, %s420
      %s442 = sphi 0, %s444
      %s445 = sphi 0, %s442
      %s446 = sphi 0, %s445
      %s462 = sphi 0, %s446
    $region4: #{gaussian_lstm_forward.1} parent=1 // loop_header_branch
      %38 = sbr.rel (%p36) target = $region8
    $region5: #{gaussian_lstm_forward.1} parent=1 // loop_body
      %s40 = ssub.s32 %s35, 1
      %s41 = ssub.s32 %s35, 2
      %s42 = sadd.s32 %s35, 1
      %s43 = ssub.s32 %s35, %s42
      %p44 = scmp.eq.s32.totalorder %s43, 0
      %s46 = sadd.s32 %s45, 1
      %s47 = scalar_select %p44, %s45, %s46
      %p50 = pneg %p44
      %p51 = scmp.eq.s32.totalorder %s35, 1
      %p52 = por %p50, %p51
      %p53 = scmp.ne.s32.totalorder %s45, %s48
      %p54 = scmp.eq.s32.totalorder %s35, 0
      %p55 = por %p53, %p54
      %p56 = scmp.ne.s32.totalorder %s45, %s48
      %p57 = scmp.eq.s32.totalorder %s40, 1
      %p58 = por %p56, %p57
      %p59 = scmp.ne.s32.totalorder %s48, %s49
      %p60 = scmp.eq.s32.totalorder %s40, 0
      %p61 = por %p59, %p60
      %p62 = scmp.ne.s32.totalorder %s48, %s49
      %p63 = scmp.eq.s32.totalorder %s41, 1
      %p64 = por %p62, %p63
      %p66 = scmp.ne.s32.totalorder %s49, %s65
      %p67 = scmp.eq.s32.totalorder %s41, 0
      %p68 = por %p66, %p67
      %s70 = sadd.s32 %s69, 1
      %p73 = scmp.eq.s32.totalorder %s35, 1
      %p74 = scmp.ne.s32.totalorder %s69, %s71
      %p75 = scmp.eq.s32.totalorder %s35, 0
      %p76 = por %p74, %p75
      %p77 = scmp.ne.s32.totalorder %s69, %s71
      %p78 = scmp.eq.s32.totalorder %s40, 1
      %p79 = por %p77, %p78
      %p80 = scmp.ne.s32.totalorder %s71, %s72
      %p81 = scmp.eq.s32.totalorder %s40, 0
      %p82 = por %p80, %p81
      %p83 = scmp.ne.s32.totalorder %s71, %s72
      %p84 = scmp.eq.s32.totalorder %s41, 1
      %p85 = por %p83, %p84
      %p87 = scmp.ne.s32.totalorder %s72, %s86
      %p88 = scmp.eq.s32.totalorder %s41, 0
      %p89 = por %p87, %p88
      %s91 = sadd.s32 %s90, 1
      %p94 = scmp.eq.s32.totalorder %s35, 1
      %p95 = scmp.ne.s32.totalorder %s90, %s92
      %p96 = scmp.eq.s32.totalorder %s35, 0
      %p97 = por %p95, %p96
      %p98 = scmp.ne.s32.totalorder %s90, %s92
      %p99 = scmp.eq.s32.totalorder %s40, 1
      %p100 = por %p98, %p99
      %p101 = scmp.ne.s32.totalorder %s92, %s93
      %p102 = scmp.eq.s32.totalorder %s40, 0
      %p103 = por %p101, %p102
      %p104 = scmp.ne.s32.totalorder %s92, %s93
      %p105 = scmp.eq.s32.totalorder %s41, 1
      %p106 = por %p104, %p105
      %p108 = scmp.ne.s32.totalorder %s93, %s107
      %p109 = scmp.eq.s32.totalorder %s41, 0
      %p110 = por %p108, %p109
      %s112 = sadd.s32 %s111, 1
      %p115 = scmp.eq.s32.totalorder %s35, 1
      %p116 = scmp.ne.s32.totalorder %s111, %s113
      %p117 = scmp.eq.s32.totalorder %s35, 0
      %p118 = por %p116, %p117
      %p119 = scmp.ne.s32.totalorder %s111, %s113
      %p120 = scmp.eq.s32.totalorder %s40, 1
      %p121 = por %p119, %p120
      %p122 = scmp.ne.s32.totalorder %s113, %s114
      %p123 = scmp.eq.s32.totalorder %s40, 0
      %p124 = por %p122, %p123
      %p125 = scmp.ne.s32.totalorder %s113, %s114
      %p126 = scmp.eq.s32.totalorder %s41, 1
      %p127 = por %p125, %p126
      %p129 = scmp.ne.s32.totalorder %s114, %s128
      %p130 = scmp.eq.s32.totalorder %s41, 0
      %p131 = por %p129, %p130
      %s133 = sadd.s32 %s132, 1
      %p136 = scmp.eq.s32.totalorder %s35, 1
      %p137 = scmp.ne.s32.totalorder %s132, %s134
      %p138 = scmp.eq.s32.totalorder %s35, 0
      %p139 = por %p137, %p138
      %p140 = scmp.ne.s32.totalorder %s132, %s134
      %p141 = scmp.eq.s32.totalorder %s40, 1
      %p142 = por %p140, %p141
      %p143 = scmp.ne.s32.totalorder %s134, %s135
      %p144 = scmp.eq.s32.totalorder %s40, 0
      %p145 = por %p143, %p144
      %p146 = scmp.ne.s32.totalorder %s134, %s135
      %p147 = scmp.eq.s32.totalorder %s41, 1
      %p148 = por %p146, %p147
      %p150 = scmp.ne.s32.totalorder %s135, %s149
      %p151 = scmp.eq.s32.totalorder %s41, 0
      %p152 = por %p150, %p151
      %s154 = sadd.s32 %s153, 1
      %p157 = scmp.eq.s32.totalorder %s35, 1
      %p158 = scmp.ne.s32.totalorder %s153, %s155
      %p159 = scmp.eq.s32.totalorder %s35, 0
      %p160 = por %p158, %p159
      %p161 = scmp.ne.s32.totalorder %s153, %s155
      %p162 = scmp.eq.s32.totalorder %s40, 1
      %p163 = por %p161, %p162
      %p164 = scmp.ne.s32.totalorder %s155, %s156
      %p165 = scmp.eq.s32.totalorder %s40, 0
      %p166 = por %p164, %p165
      %p167 = scmp.ne.s32.totalorder %s155, %s156
      %p168 = scmp.eq.s32.totalorder %s41, 1
      %p169 = por %p167, %p168
      %p171 = scmp.ne.s32.totalorder %s156, %s170
      %p172 = scmp.eq.s32.totalorder %s41, 0
      %p173 = por %p171, %p172
      %s175 = sadd.s32 %s174, 1
      %p178 = scmp.eq.s32.totalorder %s35, 1
      %p179 = scmp.ne.s32.totalorder %s174, %s176
      %p180 = scmp.eq.s32.totalorder %s35, 0
      %p181 = por %p179, %p180
      %p182 = scmp.ne.s32.totalorder %s174, %s176
      %p183 = scmp.eq.s32.totalorder %s40, 1
      %p184 = por %p182, %p183
      %p185 = scmp.ne.s32.totalorder %s176, %s177
      %p186 = scmp.eq.s32.totalorder %s40, 0
      %p187 = por %p185, %p186
      %p188 = scmp.ne.s32.totalorder %s176, %s177
      %p189 = scmp.eq.s32.totalorder %s41, 1
      %p190 = por %p188, %p189
      %p192 = scmp.ne.s32.totalorder %s177, %s191
      %p193 = scmp.eq.s32.totalorder %s41, 0
      %p194 = por %p192, %p193
      %s196 = sadd.s32 %s195, 1
      %p199 = scmp.eq.s32.totalorder %s35, 1
      %p200 = scmp.ne.s32.totalorder %s195, %s197
      %p201 = scmp.eq.s32.totalorder %s35, 0
      %p202 = por %p200, %p201
      %p203 = scmp.ne.s32.totalorder %s195, %s197
      %p204 = scmp.eq.s32.totalorder %s40, 1
      %p205 = por %p203, %p204
      %p206 = scmp.ne.s32.totalorder %s197, %s198
      %p207 = scmp.eq.s32.totalorder %s40, 0
      %p208 = por %p206, %p207
      %p209 = scmp.ne.s32.totalorder %s197, %s198
      %p210 = scmp.eq.s32.totalorder %s41, 1
      %p211 = por %p209, %p210
      %p213 = scmp.ne.s32.totalorder %s198, %s212
      %p214 = scmp.eq.s32.totalorder %s41, 0
      %p215 = por %p213, %p214
      %s217 = sadd.s32 %s216, 1
      %p220 = scmp.eq.s32.totalorder %s35, 1
      %p221 = scmp.ne.s32.totalorder %s216, %s218
      %p222 = scmp.eq.s32.totalorder %s35, 0
      %p223 = por %p221, %p222
      %p224 = scmp.ne.s32.totalorder %s216, %s218
      %p225 = scmp.eq.s32.totalorder %s40, 1
      %p226 = por %p224, %p225
      %p227 = scmp.ne.s32.totalorder %s218, %s219
      %p228 = scmp.eq.s32.totalorder %s40, 0
      %p229 = por %p227, %p228
      %p230 = scmp.ne.s32.totalorder %s218, %s219
      %p231 = scmp.eq.s32.totalorder %s41, 1
      %p232 = por %p230, %p231
      %p234 = scmp.ne.s32.totalorder %s219, %s233
      %p235 = scmp.eq.s32.totalorder %s41, 0
      %p236 = por %p234, %p235
      %s238 = sadd.s32 %s237, 1
      %p241 = scmp.eq.s32.totalorder %s35, 1
      %p242 = scmp.ne.s32.totalorder %s237, %s239
      %p243 = scmp.eq.s32.totalorder %s35, 0
      %p244 = por %p242, %p243
      %p245 = scmp.ne.s32.totalorder %s237, %s239
      %p246 = scmp.eq.s32.totalorder %s40, 1
      %p247 = por %p245, %p246
      %p248 = scmp.ne.s32.totalorder %s239, %s240
      %p249 = scmp.eq.s32.totalorder %s40, 0
      %p250 = por %p248, %p249
      %p251 = scmp.ne.s32.totalorder %s239, %s240
      %p252 = scmp.eq.s32.totalorder %s41, 1
      %p253 = por %p251, %p252
      %p255 = scmp.ne.s32.totalorder %s240, %s254
      %p256 = scmp.eq.s32.totalorder %s41, 0
      %p257 = por %p255, %p256
      %s258 = ssub.s32 %s35, %s42
      %p259 = scmp.eq.s32.totalorder %s258, 0
      %s261 = sadd.s32 %s260, 1
      %s262 = scalar_select %p259, %s260, %s261
      %p265 = pneg %p259
      %p266 = scmp.eq.s32.totalorder %s35, 1
      %p267 = por %p265, %p266
      %p268 = scmp.ne.s32.totalorder %s260, %s263
      %p269 = scmp.eq.s32.totalorder %s35, 0
      %p270 = por %p268, %p269
      %p271 = scmp.ne.s32.totalorder %s260, %s263
      %p272 = scmp.eq.s32.totalorder %s40, 1
      %p273 = por %p271, %p272
      %p274 = scmp.ne.s32.totalorder %s263, %s264
      %p275 = scmp.eq.s32.totalorder %s40, 0
      %p276 = por %p274, %p275
      %p277 = scmp.ne.s32.totalorder %s263, %s264
      %p278 = scmp.eq.s32.totalorder %s41, 1
      %p279 = por %p277, %p278
      %p281 = scmp.ne.s32.totalorder %s264, %s280
      %p282 = scmp.eq.s32.totalorder %s41, 0
      %p283 = por %p281, %p282
      %s284 = ssub.s32 %s35, %s42
      %p285 = scmp.eq.s32.totalorder %s284, 0
      %s287 = sadd.s32 %s286, 1
      %s288 = scalar_select %p285, %s286, %s287
      %p291 = pneg %p285
      %p292 = scmp.eq.s32.totalorder %s35, 1
      %p293 = por %p291, %p292
      %p294 = scmp.ne.s32.totalorder %s286, %s289
      %p295 = scmp.eq.s32.totalorder %s35, 0
      %p296 = por %p294, %p295
      %p297 = scmp.ne.s32.totalorder %s286, %s289
      %p298 = scmp.eq.s32.totalorder %s40, 1
      %p299 = por %p297, %p298
      %p300 = scmp.ne.s32.totalorder %s289, %s290
      %p301 = scmp.eq.s32.totalorder %s40, 0
      %p302 = por %p300, %p301
      %p303 = scmp.ne.s32.totalorder %s289, %s290
      %p304 = scmp.eq.s32.totalorder %s41, 1
      %p305 = por %p303, %p304
      %p307 = scmp.ne.s32.totalorder %s290, %s306
      %p308 = scmp.eq.s32.totalorder %s41, 0
      %p309 = por %p307, %p308
      %s310 = ssub.s32 %s35, %s42
      %p311 = scmp.eq.s32.totalorder %s310, 0
      %s313 = sadd.s32 %s312, 1
      %s314 = scalar_select %p311, %s312, %s313
      %p317 = pneg %p311
      %p318 = scmp.eq.s32.totalorder %s35, 1
      %p319 = por %p317, %p318
      %p320 = scmp.ne.s32.totalorder %s312, %s315
      %p321 = scmp.eq.s32.totalorder %s35, 0
      %p322 = por %p320, %p321
      %p323 = scmp.ne.s32.totalorder %s312, %s315
      %p324 = scmp.eq.s32.totalorder %s40, 1
      %p325 = por %p323, %p324
      %p326 = scmp.ne.s32.totalorder %s315, %s316
      %p327 = scmp.eq.s32.totalorder %s40, 0
      %p328 = por %p326, %p327
      %p329 = scmp.ne.s32.totalorder %s315, %s316
      %p330 = scmp.eq.s32.totalorder %s41, 1
      %p331 = por %p329, %p330
      %p333 = scmp.ne.s32.totalorder %s316, %s332
      %p334 = scmp.eq.s32.totalorder %s41, 0
      %p335 = por %p333, %p334
      %s336 = ssub.s32 %s35, %s42
      %p337 = scmp.eq.s32.totalorder %s336, 0
      %s339 = sadd.s32 %s338, 1
      %s340 = scalar_select %p337, %s338, %s339
      %p343 = pneg %p337
      %p344 = scmp.eq.s32.totalorder %s35, 1
      %p345 = por %p343, %p344
      %p346 = scmp.ne.s32.totalorder %s338, %s341
      %p347 = scmp.eq.s32.totalorder %s35, 0
      %p348 = por %p346, %p347
      %p349 = scmp.ne.s32.totalorder %s338, %s341
      %p350 = scmp.eq.s32.totalorder %s40, 1
      %p351 = por %p349, %p350
      %p352 = scmp.ne.s32.totalorder %s341, %s342
      %p353 = scmp.eq.s32.totalorder %s40, 0
      %p354 = por %p352, %p353
      %p355 = scmp.ne.s32.totalorder %s341, %s342
      %p356 = scmp.eq.s32.totalorder %s41, 1
      %p357 = por %p355, %p356
      %p359 = scmp.ne.s32.totalorder %s342, %s358
      %p360 = scmp.eq.s32.totalorder %s41, 0
      %p361 = por %p359, %p360
      %s362 = ssub.s32 %s35, %s42
      %p363 = scmp.eq.s32.totalorder %s362, 0
      %s365 = sadd.s32 %s364, 1
      %s366 = scalar_select %p363, %s364, %s365
      %p369 = pneg %p363
      %p370 = scmp.eq.s32.totalorder %s35, 1
      %p371 = por %p369, %p370
      %p372 = scmp.ne.s32.totalorder %s364, %s367
      %p373 = scmp.eq.s32.totalorder %s35, 0
      %p374 = por %p372, %p373
      %p375 = scmp.ne.s32.totalorder %s364, %s367
      %p376 = scmp.eq.s32.totalorder %s40, 1
      %p377 = por %p375, %p376
      %p378 = scmp.ne.s32.totalorder %s367, %s368
      %p379 = scmp.eq.s32.totalorder %s40, 0
      %p380 = por %p378, %p379
      %p381 = scmp.ne.s32.totalorder %s367, %s368
      %p382 = scmp.eq.s32.totalorder %s41, 1
      %p383 = por %p381, %p382
      %p385 = scmp.ne.s32.totalorder %s368, %s384
      %p386 = scmp.eq.s32.totalorder %s41, 0
      %p387 = por %p385, %p386
      %s388 = ssub.s32 %s35, %s42
      %p389 = scmp.eq.s32.totalorder %s388, 0
      %s391 = sadd.s32 %s390, 1
      %s392 = scalar_select %p389, %s390, %s391
      %p395 = pneg %p389
      %p396 = scmp.eq.s32.totalorder %s35, 1
      %p397 = por %p395, %p396
      %p398 = scmp.ne.s32.totalorder %s390, %s393
      %p399 = scmp.eq.s32.totalorder %s35, 0
      %p400 = por %p398, %p399
      %p401 = scmp.ne.s32.totalorder %s390, %s393
      %p402 = scmp.eq.s32.totalorder %s40, 1
      %p403 = por %p401, %p402
      %p404 = scmp.ne.s32.totalorder %s393, %s394
      %p405 = scmp.eq.s32.totalorder %s40, 0
      %p406 = por %p404, %p405
      %p407 = scmp.ne.s32.totalorder %s393, %s394
      %p408 = scmp.eq.s32.totalorder %s41, 1
      %p409 = por %p407, %p408
      %p411 = scmp.ne.s32.totalorder %s394, %s410
      %p412 = scmp.eq.s32.totalorder %s41, 0
      %p413 = por %p411, %p412
      %s414 = ssub.s32 %s35, %s42
      %p415 = scmp.eq.s32.totalorder %s414, 0
      %s417 = sadd.s32 %s416, 1
      %s418 = scalar_select %p415, %s416, %s417
      %p421 = pneg %p415
      %p422 = scmp.eq.s32.totalorder %s35, 1
      %p423 = por %p421, %p422
      %p424 = scmp.ne.s32.totalorder %s416, %s419
      %p425 = scmp.eq.s32.totalorder %s35, 0
      %p426 = por %p424, %p425
      %p427 = scmp.ne.s32.totalorder %s416, %s419
      %p428 = scmp.eq.s32.totalorder %s40, 1
      %p429 = por %p427, %p428
      %p430 = scmp.ne.s32.totalorder %s419, %s420
      %p431 = scmp.eq.s32.totalorder %s40, 0
      %p432 = por %p430, %p431
      %p433 = scmp.ne.s32.totalorder %s419, %s420
      %p434 = scmp.eq.s32.totalorder %s41, 1
      %p435 = por %p433, %p434
      %p437 = scmp.ne.s32.totalorder %s420, %s436
      %p438 = scmp.eq.s32.totalorder %s41, 0
      %p439 = por %p437, %p438
      %s440 = ssub.s32 %s35, %s42
      %p441 = scmp.eq.s32.totalorder %s440, 0
      %s443 = sadd.s32 %s442, 1
      %s444 = scalar_select %p441, %s442, %s443
      %p447 = pneg %p441
      %p448 = scmp.eq.s32.totalorder %s35, 1
      %p449 = por %p447, %p448
      %p450 = scmp.ne.s32.totalorder %s442, %s445
      %p451 = scmp.eq.s32.totalorder %s35, 0
      %p452 = por %p450, %p451
      %p453 = scmp.ne.s32.totalorder %s442, %s445
      %p454 = scmp.eq.s32.totalorder %s40, 1
      %p455 = por %p453, %p454
      %p456 = scmp.ne.s32.totalorder %s445, %s446
      %p457 = scmp.eq.s32.totalorder %s40, 0
      %p458 = por %p456, %p457
      %p459 = scmp.ne.s32.totalorder %s445, %s446
      %p460 = scmp.eq.s32.totalorder %s41, 1
      %p461 = por %p459, %p460
      %p463 = scmp.ne.s32.totalorder %s446, %s462
      %p464 = scmp.eq.s32.totalorder %s41, 0
      %p465 = por %p463, %p464
      %p466 = scmp.le.s32.totalorder 1, %s35
      %p467 = scmp.lt.s32.totalorder %s35, 3
      %p468 = pnand %p466, %p467
      %p469 = pneg %p468
      // Predicated region
      $region9: #{gaussian_lstm_forward.1} parent=5 // pred_check
        _
      $region10: #{gaussian_lstm_forward.1} parent=5 // pred_check_branch
        %471 = sbr.rel (%p468) target = $region12
      $region11: #{gaussian_lstm_forward.1} parent=5 // pred_region
        %s472 = ssub.s32 %s35, 1
        // Predicated region
        $region13: #{gaussian_lstm_forward.1} parent=11 // pred_check
          %p473 = pneg %p82
        $region14: #{gaussian_lstm_forward.1} parent=11 // pred_check_branch
          %475 = sbr.rel (%p473) target = $region16
        $region15: #{gaussian_lstm_forward.1} parent=11 // pred_region
          %477 = vsyncadd [#allocation3], 0
          %s478 = sshll.u32 %s1, 4
          %s479 = int_to_ptr.hbm [resolvable:$true] %s478
          %s480 = sshll.u32 [#allocation2], 4
          %s481 = int_to_ptr.vmem [resolvable:$true] %s480
          %486 = dma.hbm_to_vmem [thread:$0]  %s479, 256, %s481, [#allocation3], 128, 128, 8
        $region16: #{gaussian_lstm_forward.1} parent=11 // pred_fallthru
          _
        // Predicated region
        $region17: #{gaussian_lstm_forward.1} parent=11 // pred_check
          %p487 = pneg %p103
        $region18: #{gaussian_lstm_forward.1} parent=11 // pred_check_branch
          %489 = sbr.rel (%p487) target = $region20
        $region19: #{gaussian_lstm_forward.1} parent=11 // pred_region
          _
        $region20: #{gaussian_lstm_forward.1} parent=11 // pred_fallthru
          _
        // Predicated region
        $region21: #{gaussian_lstm_forward.1} parent=11 // pred_check
          %p490 = pneg %p124
        $region22: #{gaussian_lstm_forward.1} parent=11 // pred_check_branch
          %492 = sbr.rel (%p490) target = $region24
        $region23: #{gaussian_lstm_forward.1} parent=11 // pred_region
          _
        $region24: #{gaussian_lstm_forward.1} parent=11 // pred_fallthru
          _
        // Predicated region
        $region25: #{gaussian_lstm_forward.1} parent=11 // pred_check
          %p493 = pneg %p145
        $region26: #{gaussian_lstm_forward.1} parent=11 // pred_check_branch
          %495 = sbr.rel (%p493) target = $region28
        $region27: #{gaussian_lstm_forward.1} parent=11 // pred_region
          %497 = vsyncadd [#allocation6], 0
          %s498 = sshll.u32 %s4, 4
          %s499 = int_to_ptr.hbm [resolvable:$true] %s498
          %s500 = sshll.u32 [#allocation5], 4
          %s501 = int_to_ptr.vmem [resolvable:$true] %s500
          %506 = dma.hbm_to_vmem [thread:$0]  %s499, 1024, %s501, [#allocation6], 128, 128, 8
        $region28: #{gaussian_lstm_forward.1} parent=11 // pred_fallthru
          _
        // Predicated region
        $region29: #{gaussian_lstm_forward.1} parent=11 // pred_check
          %p507 = pneg %p166
        $region30: #{gaussian_lstm_forward.1} parent=11 // pred_check_branch
          %509 = sbr.rel (%p507) target = $region32
        $region31: #{gaussian_lstm_forward.1} parent=11 // pred_region
          _
        $region32: #{gaussian_lstm_forward.1} parent=11 // pred_fallthru
          _
        // Predicated region
        $region33: #{gaussian_lstm_forward.1} parent=11 // pred_check
          %p510 = pneg %p187
        $region34: #{gaussian_lstm_forward.1} parent=11 // pred_check_branch
          %512 = sbr.rel (%p510) target = $region36
        $region35: #{gaussian_lstm_forward.1} parent=11 // pred_region
          _
        $region36: #{gaussian_lstm_forward.1} parent=11 // pred_fallthru
          _
        // Predicated region
        $region37: #{gaussian_lstm_forward.1} parent=11 // pred_check
          %p513 = pneg %p208
        $region38: #{gaussian_lstm_forward.1} parent=11 // pred_check_branch
          %515 = sbr.rel (%p513) target = $region40
        $region39: #{gaussian_lstm_forward.1} parent=11 // pred_region
          _
        $region40: #{gaussian_lstm_forward.1} parent=11 // pred_fallthru
          _
        // Predicated region
        $region41: #{gaussian_lstm_forward.1} parent=11 // pred_check
          %p516 = pneg %p229
        $region42: #{gaussian_lstm_forward.1} parent=11 // pred_check_branch
          %518 = sbr.rel (%p516) target = $region44
        $region43: #{gaussian_lstm_forward.1} parent=11 // pred_region
          _
        $region44: #{gaussian_lstm_forward.1} parent=11 // pred_fallthru
          _
        // Predicated region
        $region45: #{gaussian_lstm_forward.1} parent=11 // pred_check
          %p519 = pneg %p250
        $region46: #{gaussian_lstm_forward.1} parent=11 // pred_check_branch
          %521 = sbr.rel (%p519) target = $region48
        $region47: #{gaussian_lstm_forward.1} parent=11 // pred_region
          _
        $region48: #{gaussian_lstm_forward.1} parent=11 // pred_fallthru
          _
      $region12: #{gaussian_lstm_forward.1} parent=5 // pred_fallthru
        _
      %p522 = scmp.lt.s32.totalorder %s35, 2
      // Predicated region
      $region49: #{gaussian_lstm_forward.1} parent=5 // pred_check
        %p523 = pneg %p522
      $region50: #{gaussian_lstm_forward.1} parent=5 // pred_check_branch
        %525 = sbr.rel (%p523) target = $region52
      $region51: #{gaussian_lstm_forward.1} parent=5 // pred_region
        // Predicated region
        $region53: #{gaussian_lstm_forward.1} parent=51 // pred_check
          %p526 = pneg %p55
        $region54: #{gaussian_lstm_forward.1} parent=51 // pred_check_branch
          %528 = sbr.rel (%p526) target = $region56
        $region55: #{gaussian_lstm_forward.1} parent=51 // pred_region
          %p529 = scmp.lt.s32.totalorder %s35, 1
          %s530 = scalar_select %p529, %s35, 1
          %s531 = smul.addr %s530, 8
          %s532 = scalar_lea.vmem %s0, %s531
        $region56: #{gaussian_lstm_forward.1} parent=51 // pred_fallthru
          _
        // Predicated region
        $region57: #{gaussian_lstm_forward.1} parent=51 // pred_check
          %p533 = pneg %p270
        $region58: #{gaussian_lstm_forward.1} parent=51 // pred_check_branch
          %535 = sbr.rel (%p533) target = $region60
        $region59: #{gaussian_lstm_forward.1} parent=51 // pred_region
          %s536 = sand.u32 %s35, 1
          %s537 = scalar_lea.sflag [#allocation3], %s536
          %s538 = sand.u32 %s260, 1
          %s539 = smul.addr %s538, 16
          %s540 = scalar_lea.vmem [#allocation7], %s539
          %542 = vsyncadd %s537, 0
          %s543 = smul.addr %s35, 8
          %s544 = scalar_lea.hbm %s10, %s543
          %s545 = sshll.u32 %s544, 4
          %s546 = int_to_ptr.hbm [resolvable:$true] %s545
          %s547 = sshll.u32 %s540, 4
          %s548 = int_to_ptr.vmem [resolvable:$true] %s547
          %553 = dma.hbm_to_vmem [thread:$0]  %s546, 256, %s548, %s537, 256, 128, 8
        $region60: #{gaussian_lstm_forward.1} parent=51 // pred_fallthru
          _
        // Predicated region
        $region61: #{gaussian_lstm_forward.1} parent=51 // pred_check
          %p554 = pneg %p296
        $region62: #{gaussian_lstm_forward.1} parent=51 // pred_check_branch
          %556 = sbr.rel (%p554) target = $region64
        $region63: #{gaussian_lstm_forward.1} parent=51 // pred_region
          %s557 = sand.u32 %s35, 1
          %s558 = scalar_lea.sflag [#allocation3], %s557
          %s559 = sand.u32 %s286, 1
          %s560 = smul.addr %s559, 16
          %s561 = scalar_lea.vmem [#allocation8], %s560
          %563 = vsyncadd %s558, 0
          %s564 = smul.addr %s35, 8
          %s565 = scalar_lea.hbm %s11, %s564
          %s566 = sshll.u32 %s565, 4
          %s567 = int_to_ptr.hbm [resolvable:$true] %s566
          %s568 = sshll.u32 %s561, 4
          %s569 = int_to_ptr.vmem [resolvable:$true] %s568
          %574 = dma.hbm_to_vmem [thread:$0]  %s567, 256, %s569, %s558, 256, 128, 8
        $region64: #{gaussian_lstm_forward.1} parent=51 // pred_fallthru
          _
        // Predicated region
        $region65: #{gaussian_lstm_forward.1} parent=51 // pred_check
          %p575 = pneg %p322
        $region66: #{gaussian_lstm_forward.1} parent=51 // pred_check_branch
          %577 = sbr.rel (%p575) target = $region68
        $region67: #{gaussian_lstm_forward.1} parent=51 // pred_region
          %s578 = sand.u32 %s35, 1
          %s579 = scalar_lea.sflag [#allocation3], %s578
          %s580 = sand.u32 %s312, 1
          %s581 = smul.addr %s580, 8
          %s582 = scalar_lea.vmem [#allocation9], %s581
          %584 = vsyncadd %s579, 0
          %s585 = smul.addr %s35, 8
          %s586 = scalar_lea.hbm %s12, %s585
          %s588 = sshll.u32 %s586, 4
          %s589 = int_to_ptr.hbm [resolvable:$true] %s588
          %s590 = sshll.u32 %s582, 4
          %s591 = int_to_ptr.vmem [resolvable:$true] %s590
          %593 = dma.hbm_to_vmem [thread:$0]  %s589, 128, %s591, %s579
        $region68: #{gaussian_lstm_forward.1} parent=51 // pred_fallthru
          _
      $region52: #{gaussian_lstm_forward.1} parent=5 // pred_fallthru
        _
      %p594 = scmp.le.s32.totalorder 1, %s35
      %p595 = scmp.lt.s32.totalorder %s35, 3
      %p596 = pnand %p594, %p595
      %p597 = pneg %p596
      // Predicated region
      $region69: #{gaussian_lstm_forward.1} parent=5 // pred_check
        _
      $region70: #{gaussian_lstm_forward.1} parent=5 // pred_check_branch
        %599 = sbr.rel (%p596) target = $region72
      $region71: #{gaussian_lstm_forward.1} parent=5 // pred_region
        %s600 = ssub.s32 %s35, 1
        // Predicated region
        $region73: #{gaussian_lstm_forward.1} parent=71 // pred_check
          %p601 = pneg %p82
        $region74: #{gaussian_lstm_forward.1} parent=71 // pred_check_branch
          %603 = sbr.rel (%p601) target = $region76
        $region75: #{gaussian_lstm_forward.1} parent=71 // pred_region
          %605 = dma.done [#allocation3], 256
        $region76: #{gaussian_lstm_forward.1} parent=71 // pred_fallthru
          _
        // Predicated region
        $region77: #{gaussian_lstm_forward.1} parent=71 // pred_check
          %p606 = pneg %p145
        $region78: #{gaussian_lstm_forward.1} parent=71 // pred_check_branch
          %608 = sbr.rel (%p606) target = $region80
        $region79: #{gaussian_lstm_forward.1} parent=71 // pred_region
          %610 = dma.done [#allocation6], 1024
        $region80: #{gaussian_lstm_forward.1} parent=71 // pred_fallthru
          _
        %s611 = sand.u32 %s40, 1
        %s612 = scalar_lea.sflag [#allocation3], %s611
        %s613 = sand.u32 %s263, 1
        %s614 = smul.addr %s613, 16
        %s615 = scalar_lea.vmem [#allocation7], %s614
        // Predicated region
        $region81: #{gaussian_lstm_forward.1} parent=71 // pred_check
          %p616 = pneg %p276
        $region82: #{gaussian_lstm_forward.1} parent=71 // pred_check_branch
          %618 = sbr.rel (%p616) target = $region84
        $region83: #{gaussian_lstm_forward.1} parent=71 // pred_region
          %620 = dma.done %s612, 256
        $region84: #{gaussian_lstm_forward.1} parent=71 // pred_fallthru
          _
        %s621 = sand.u32 %s40, 1
        %s622 = scalar_lea.sflag [#allocation3], %s621
        %s623 = sand.u32 %s289, 1
        %s624 = smul.addr %s623, 16
        %s625 = scalar_lea.vmem [#allocation8], %s624
        // Predicated region
        $region85: #{gaussian_lstm_forward.1} parent=71 // pred_check
          %p626 = pneg %p302
        $region86: #{gaussian_lstm_forward.1} parent=71 // pred_check_branch
          %628 = sbr.rel (%p626) target = $region88
        $region87: #{gaussian_lstm_forward.1} parent=71 // pred_region
          %630 = dma.done %s622, 256
        $region88: #{gaussian_lstm_forward.1} parent=71 // pred_fallthru
          _
        %s631 = sand.u32 %s40, 1
        %s632 = scalar_lea.sflag [#allocation3], %s631
        %s633 = sand.u32 %s315, 1
        %s634 = smul.addr %s633, 8
        %s635 = scalar_lea.vmem [#allocation9], %s634
        // Predicated region
        $region89: #{gaussian_lstm_forward.1} parent=71 // pred_check
          %p636 = pneg %p328
        $region90: #{gaussian_lstm_forward.1} parent=71 // pred_check_branch
          %638 = sbr.rel (%p636) target = $region92
        $region91: #{gaussian_lstm_forward.1} parent=71 // pred_region
          %640 = dma.done %s632, 128
        $region92: #{gaussian_lstm_forward.1} parent=71 // pred_fallthru
          _
        %p641 = scmp.lt.s32.totalorder %s40, 1
        %s642 = scalar_select %p641, %s40, 1
        %s643 = smul.addr %s642, 8
        %s644 = scalar_lea.vmem %s0, %s643
        %p645 = pneg %p61
        %p646 = pneg %p58
        %p647 = pneg %p82
        %p648 = pneg %p79
        %p649 = pneg %p103
        %p650 = pneg %p100
        %p651 = pneg %p124
        %p652 = pneg %p121
        %p653 = pneg %p145
        %p654 = pneg %p142
        %p655 = pneg %p166
        %p656 = pneg %p163
        %p657 = pneg %p187
        %p658 = pneg %p184
        %p659 = pneg %p208
        %p660 = pneg %p205
        %p661 = pneg %p229
        %p662 = pneg %p226
        %p663 = pneg %p250
        %p664 = pneg %p247
        %s665 = sand.u32 %s40, 1
        %s666 = scalar_lea.sflag [#allocation3], %s665
        %s667 = sand.u32 %s263, 1
        %s668 = smul.addr %s667, 16
        %s669 = scalar_lea.vmem [#allocation7], %s668
        %p670 = pneg %p276
        %p671 = pneg %p273
        %s672 = sand.u32 %s40, 1
        %s673 = scalar_lea.sflag [#allocation3], %s672
        %s674 = sand.u32 %s289, 1
        %s675 = smul.addr %s674, 16
        %s676 = scalar_lea.vmem [#allocation8], %s675
        %p677 = pneg %p302
        %p678 = pneg %p299
        %s679 = sand.u32 %s40, 1
        %s680 = scalar_lea.sflag [#allocation3], %s679
        %s681 = sand.u32 %s315, 1
        %s682 = smul.addr %s681, 8
        %s683 = scalar_lea.vmem [#allocation9], %s682
        %p684 = pneg %p328
        %p685 = pneg %p325
        %p686 = pneg %p354
        %p687 = pneg %p351
        %s688 = sand.u32 %s341, 1
        %s689 = scalar_lea.sflag [#allocation4], %s688
        %s690 = sand.u32 %s341, 1
        %s691 = smul.addr %s690, 8
        %s692 = scalar_lea.vmem [#allocation10], %s691
        %p693 = pneg %p380
        %p694 = pneg %p377
        %s695 = sand.u32 %s40, 1
        %s696 = scalar_lea.sflag [#allocation12], %s695
        %s697 = sand.u32 %s367, 1
        %s698 = smul.addr %s697, 8
        %s699 = scalar_lea.vmem [#allocation11], %s698
        %p700 = pneg %p406
        %p701 = pneg %p403
        %s702 = sand.u32 %s40, 1
        %s703 = scalar_lea.sflag [#allocation12], %s702
        %s704 = sand.u32 %s393, 1
        %s705 = smul.addr %s704, 8
        %s706 = scalar_lea.vmem [#allocation13], %s705
        %p707 = pneg %p432
        %p708 = pneg %p429
        %s709 = sand.u32 %s40, 1
        %s710 = scalar_lea.sflag [#allocation15], %s709
        %s711 = sand.u32 %s419, 1
        %s712 = smul.addr %s711, 16
        %s713 = scalar_lea.vmem [#allocation14], %s712
        %p714 = pneg %p458
        %p715 = pneg %p455
        %s716 = sand.u32 %s40, 1
        %s717 = scalar_lea.sflag [#allocation15], %s716
        %s718 = sand.u32 %s445, 1
        %s719 = smul.addr %s718, 16
        %s720 = scalar_lea.vmem [#allocation16], %s719
        %p721 = scmp.lt.s32.totalorder %s40, 1
        %s722 = scalar_select %p721, %s40, 1
        %s723 = smul.addr %s722, 8
        %s724 = scalar_lea.vmem %s0, %s723
        %v725 = vld [vmem:[%s724] sm:$0xff]
        %v726 = vld [vmem:[#allocation2] sm:$0xff]
        %v727 = vld [vmem:[#allocation2 + $0x8] sm:$0xff]
        %v728 = vld [vmem:[%s2] sm:$0x1]
        %v730 = vperm.slane %v728, 0
        %vm732 = vcmask 130048
        %v734 = vsel %vm732, %v725, 0
        %736 = vmatpush.msra.mxu0 0.0
        %737 = vmatpush.msra.mxu0 0.0
        %738 = vmatpush.msra.mxu0 0.0
        %739 = vmatpush.msra.mxu0 0.0
        %740 = vmatpush.msra.mxu0 0.0
        %741 = vmatpush.msra.mxu0 0.0
        %742 = vmatpush.msra.mxu0 0.0
        %743 = vmatpush.msra.mxu0 0.0
        %744 = vmatpush.msra.mxu0 0.0
        %745 = vmatpush.msra.mxu0 0.0
        %746 = vmatpush.msra.mxu0 0.0
        %747 = vmatpush.msra.mxu0 0.0
        %748 = vmatpush.msra.mxu0 0.0
        %749 = vmatpush.msra.mxu0 0.0
        %750 = vmatpush.msra.mxu0 %v727
        %751 = vmatpush.msra.mxu0 %v726
        %752 = vmatmul.f32.gmra.mxu0 %v734
        %v753 = vpop.f32.mrf.mxu0
        %v754 = vadd.f32 %v730, %v753
        %755 = vdwg.mxu0
        %v756 = vld [vmem:[%s615] sm:$0xff]
        %v757 = vld [vmem:[%s625] sm:$0xff]
        %v758 = vld [vmem:[%s3] sm:$0xff]
        %v759 = vld [vmem:[%s3 + $0x8] sm:$0xff]
        %v760 = vld [vmem:[%s3 + $0x10] sm:$0xff]
        %v761 = vld [vmem:[%s3 + $0x18] sm:$0xff]
        %v762 = vld [vmem:[#allocation5] sm:$0xff]
        %v763 = vld [vmem:[#allocation5 + $0x8] sm:$0xff]
        %v764 = vld [vmem:[#allocation5 + $0x10] sm:$0xff]
        %v765 = vld [vmem:[#allocation5 + $0x18] sm:$0xff]
        %vm766 = vcmask 261120
        %v768 = vsel %vm766, %v756, 0
        %770 = vmatpush.msra.mxu0 0.0
        %771 = vmatpush.msra.mxu0 0.0
        %772 = vmatpush.msra.mxu0 0.0
        %773 = vmatpush.msra.mxu0 0.0
        %774 = vmatpush.msra.mxu0 0.0
        %775 = vmatpush.msra.mxu0 0.0
        %776 = vmatpush.msra.mxu0 0.0
        %777 = vmatpush.msra.mxu0 0.0
        %778 = vmatpush.msra.mxu0 0.0
        %779 = vmatpush.msra.mxu0 0.0
        %780 = vmatpush.msra.mxu0 0.0
        %781 = vmatpush.msra.mxu0 0.0
        %782 = vmatpush.msra.mxu0 %v765
        %783 = vmatpush.msra.mxu0 %v764
        %784 = vmatpush.msra.mxu0 %v763
        %785 = vmatpush.msra.mxu0 %v762
        %786 = vmatmul.f32.gmra.mxu0 %v768
        %v787 = vpop.f32.mrf.mxu0
        %v788 = vadd.f32 0.0, %v787
        %789 = vdwg.mxu0
        %v791 = vsel %vm766, %v754, 0
        %793 = vmatpush.msra.mxu0 0.0
        %794 = vmatpush.msra.mxu0 0.0
        %795 = vmatpush.msra.mxu0 0.0
        %796 = vmatpush.msra.mxu0 0.0
        %797 = vmatpush.msra.mxu0 0.0
        %798 = vmatpush.msra.mxu0 0.0
        %799 = vmatpush.msra.mxu0 0.0
        %800 = vmatpush.msra.mxu0 0.0
        %801 = vmatpush.msra.mxu0 0.0
        %802 = vmatpush.msra.mxu0 0.0
        %803 = vmatpush.msra.mxu0 0.0
        %804 = vmatpush.msra.mxu0 0.0
        %805 = vmatpush.msra.mxu0 %v761
        %806 = vmatpush.msra.mxu0 %v760
        %807 = vmatpush.msra.mxu0 %v759
        %808 = vmatpush.msra.mxu0 %v758
        %809 = vmatmul.f32.gmra.mxu0 %v791
        %v810 = vpop.f32.mrf.mxu0
        %v811 = vadd.f32 %v788, %v810
        %812 = vdwg.mxu0
        %v813 = vld [vmem:[%s5] sm:$0x1]
        %v815 = vperm.slane %v813, 0
        %v817 = vadd.f32 %v811, %v815
        %v818 = vxor.u32 %v817, 2147483648
        %v819 = vmul.f32 %v818, 1.442695
        %v820 = vpow.pop %v819
        %v821 = vadd.f32 %v820, 1.0
        %v822 = vrcp.pop %v821
        %v823 = vmul.f32 %v821, %v822
        %v824 = vsub.f32 1.0, %v823
        %v825 = vmul.f32 %v822, %v824
        %v826 = vadd.f32 %v822, %v825
        %vm827 = vweird.f32 %v821
        %vm828 = vweird.f32 %v822
        %vm829 = vmor %vm827, %vm828
        %v830 = vsel %vm829, %v822, %v826
        %v831 = vand.u32 2147483647, %v821
        %vm832 = vcmp.eq.f32.partialorder %v831, 8.507059e+37
        %v833 = vand.u32 %v821, 2147483648
        %v834 = vor.u32 1.1754944e-38, %v833
        %v835 = vsel %vm832, %v834, %v830
        %v836 = vmul.f32 1.0, %v835
        %v837 = vtanh.pop %v817
        %839 = vrot.lane.b32.xlu0 %v757, 32
        %v840 = vpop.permute.xlu0 %839
        %v842 = vmul.f32 %v836, %v840
        %844 = vrot.lane.b32.xlu0 %v837, 64
        %v845 = vpop.permute.xlu0 %844
        %v847 = vmul.f32 %v836, %v845
        %849 = vrot.lane.b32.xlu0 %v847, 32
        %v850 = vpop.permute.xlu0 %849
        %v852 = vadd.f32 %v842, %v850
        %v853 = vtanh.pop %v852
        %855 = vrot.lane.b32.xlu0 %v853, 64
        %v856 = vpop.permute.xlu0 %855
        %v858 = vmul.f32 %v836, %v856
        %860 = vrot.lane.b32.xlu0 %v858, 32
        %v861 = vpop.permute.xlu0 %860
        %863 = vst.msk [vmem:[%s713] sm:$0xff] %vm766, %v861
        %865 = vrot.lane.b32.xlu0 %v852, 96
        %v866 = vpop.permute.xlu0 %865
        %868 = vst.msk [vmem:[%s720] sm:$0xff] %vm766, %v866
        %s869 = scalar_lea.vmem %s615, 8 [#allocation7]
        %v870 = vld [vmem:[%s869] sm:$0xff]
        %s871 = scalar_lea.vmem %s625, 8 [#allocation8]
        %v872 = vld [vmem:[%s871] sm:$0xff]
        %s873 = scalar_lea.vmem %s3, 32
        %v874 = vld [vmem:[%s873] sm:$0xff]
        %v875 = vld [vmem:[%s873 + $0x8] sm:$0xff]
        %v876 = vld [vmem:[%s873 + $0x10] sm:$0xff]
        %v877 = vld [vmem:[%s873 + $0x18] sm:$0xff]
        %s878 = scalar_lea.vmem [#allocation5], 32
        %v879 = vld [vmem:[%s878] sm:$0xff]
        %v880 = vld [vmem:[%s878 + $0x8] sm:$0xff]
        %v881 = vld [vmem:[%s878 + $0x10] sm:$0xff]
        %v882 = vld [vmem:[%s878 + $0x18] sm:$0xff]
        %v884 = vsel %vm766, %v870, 0
        %886 = vmatpush.msra.mxu0 0.0
        %887 = vmatpush.msra.mxu0 0.0
        %888 = vmatpush.msra.mxu0 0.0
        %889 = vmatpush.msra.mxu0 0.0
        %890 = vmatpush.msra.mxu0 0.0
        %891 = vmatpush.msra.mxu0 0.0
        %892 = vmatpush.msra.mxu0 0.0
        %893 = vmatpush.msra.mxu0 0.0
        %894 = vmatpush.msra.mxu0 0.0
        %895 = vmatpush.msra.mxu0 0.0
        %896 = vmatpush.msra.mxu0 0.0
        %897 = vmatpush.msra.mxu0 0.0
        %898 = vmatpush.msra.mxu0 %v882
        %899 = vmatpush.msra.mxu0 %v881
        %900 = vmatpush.msra.mxu0 %v880
        %901 = vmatpush.msra.mxu0 %v879
        %902 = vmatmul.f32.gmra.mxu0 %v884
        %v903 = vpop.f32.mrf.mxu0
        %v904 = vadd.f32 0.0, %v903
        %905 = vdwg.mxu0
        %v906 = vsel %vm766, %v861, 0
        %908 = vmatpush.msra.mxu0 0.0
        %909 = vmatpush.msra.mxu0 0.0
        %910 = vmatpush.msra.mxu0 0.0
        %911 = vmatpush.msra.mxu0 0.0
        %912 = vmatpush.msra.mxu0 0.0
        %913 = vmatpush.msra.mxu0 0.0
        %914 = vmatpush.msra.mxu0 0.0
        %915 = vmatpush.msra.mxu0 0.0
        %916 = vmatpush.msra.mxu0 0.0
        %917 = vmatpush.msra.mxu0 0.0
        %918 = vmatpush.msra.mxu0 0.0
        %919 = vmatpush.msra.mxu0 0.0
        %920 = vmatpush.msra.mxu0 %v877
        %921 = vmatpush.msra.mxu0 %v876
        %922 = vmatpush.msra.mxu0 %v875
        %923 = vmatpush.msra.mxu0 %v874
        %924 = vmatmul.f32.gmra.mxu0 %v906
        %v925 = vpop.f32.mrf.mxu0
        %v926 = vadd.f32 %v904, %v925
        %927 = vdwg.mxu0
        %s928 = scalar_lea.vmem %s5, 1
        %v929 = vld [vmem:[%s928] sm:$0x1]
        %v931 = vperm.slane %v929, 0
        %v933 = vadd.f32 %v926, %v931
        %v934 = vxor.u32 %v933, 2147483648
        %v935 = vmul.f32 %v934, 1.442695
        %v936 = vpow.pop %v935
        %v937 = vadd.f32 %v936, 1.0
        %v938 = vrcp.pop %v937
        %v939 = vmul.f32 %v937, %v938
        %v940 = vsub.f32 1.0, %v939
        %v941 = vmul.f32 %v938, %v940
        %v942 = vadd.f32 %v938, %v941
        %vm943 = vweird.f32 %v937
        %vm944 = vweird.f32 %v938
        %vm945 = vmor %vm943, %vm944
        %v946 = vsel %vm945, %v938, %v942
        %v947 = vand.u32 2147483647, %v937
        %vm948 = vcmp.eq.f32.partialorder %v947, 8.507059e+37
        %v949 = vand.u32 %v937, 2147483648
        %v950 = vor.u32 1.1754944e-38, %v949
        %v951 = vsel %vm948, %v950, %v946
        %v952 = vmul.f32 1.0, %v951
        %v953 = vtanh.pop %v933
        %955 = vrot.lane.b32.xlu0 %v872, 32
        %v956 = vpop.permute.xlu0 %955
        %v958 = vmul.f32 %v952, %v956
        %960 = vrot.lane.b32.xlu0 %v953, 64
        %v961 = vpop.permute.xlu0 %960
        %v963 = vmul.f32 %v952, %v961
        %965 = vrot.lane.b32.xlu0 %v963, 32
        %v966 = vpop.permute.xlu0 %965
        %v968 = vadd.f32 %v958, %v966
        %v969 = vtanh.pop %v968
        %971 = vrot.lane.b32.xlu0 %v969, 64
        %v972 = vpop.permute.xlu0 %971
        %v974 = vmul.f32 %v952, %v972
        %976 = vrot.lane.b32.xlu0 %v974, 32
        %v977 = vpop.permute.xlu0 %976
        %s979 = scalar_lea.vmem %s713, 8 [#allocation14]
        %980 = vst.msk [vmem:[%s979] sm:$0xff] %vm766, %v977
        %982 = vrot.lane.b32.xlu0 %v968, 96
        %v983 = vpop.permute.xlu0 %982
        %s985 = scalar_lea.vmem %s720, 8 [#allocation16]
        %986 = vst.msk [vmem:[%s985] sm:$0xff] %vm766, %v983
        %v987 = vld [vmem:[%s6] sm:$0xff]
        %v988 = vld [vmem:[%s6 + $0x8] sm:$0xff]
        %v989 = vld [vmem:[%s6 + $0x10] sm:$0xff]
        %v990 = vld [vmem:[%s6 + $0x18] sm:$0xff]
        %v991 = vld [vmem:[%s7] sm:$0x1]
        %v993 = vperm.slane %v991, 0
        %v995 = vsel %vm766, %v977, 0
        %997 = vmatpush.msra.mxu0 0.0
        %998 = vmatpush.msra.mxu0 0.0
        %999 = vmatpush.msra.mxu0 0.0
        %1000 = vmatpush.msra.mxu0 0.0
        %1001 = vmatpush.msra.mxu0 0.0
        %1002 = vmatpush.msra.mxu0 0.0
        %1003 = vmatpush.msra.mxu0 0.0
        %1004 = vmatpush.msra.mxu0 0.0
        %1005 = vmatpush.msra.mxu0 0.0
        %1006 = vmatpush.msra.mxu0 0.0
        %1007 = vmatpush.msra.mxu0 0.0
        %1008 = vmatpush.msra.mxu0 0.0
        %1009 = vmatpush.msra.mxu0 %v990
        %1010 = vmatpush.msra.mxu0 %v989
        %1011 = vmatpush.msra.mxu0 %v988
        %1012 = vmatpush.msra.mxu0 %v987
        %1013 = vmatmul.f32.gmra.mxu0 %v995
        %v1014 = vpop.f32.mrf.mxu0
        %v1015 = vadd.f32 %v993, %v1014
        %1016 = vdwg.mxu0
        %v1017 = vld [vmem:[%s8] sm:$0xff]
        %v1018 = vld [vmem:[%s8 + $0x8] sm:$0xff]
        %v1019 = vld [vmem:[%s8 + $0x10] sm:$0xff]
        %v1020 = vld [vmem:[%s8 + $0x18] sm:$0xff]
        %v1021 = vld [vmem:[%s9] sm:$0x1]
        %v1023 = vperm.slane %v1021, 0
        %1025 = vmatpush.msra.mxu0 0.0
        %1026 = vmatpush.msra.mxu0 0.0
        %1027 = vmatpush.msra.mxu0 0.0
        %1028 = vmatpush.msra.mxu0 0.0
        %1029 = vmatpush.msra.mxu0 0.0
        %1030 = vmatpush.msra.mxu0 0.0
        %1031 = vmatpush.msra.mxu0 0.0
        %1032 = vmatpush.msra.mxu0 0.0
        %1033 = vmatpush.msra.mxu0 0.0
        %1034 = vmatpush.msra.mxu0 0.0
        %1035 = vmatpush.msra.mxu0 0.0
        %1036 = vmatpush.msra.mxu0 0.0
        %1037 = vmatpush.msra.mxu0 %v1020
        %1038 = vmatpush.msra.mxu0 %v1019
        %1039 = vmatpush.msra.mxu0 %v1018
        %1040 = vmatpush.msra.mxu0 %v1017
        %1041 = vmatmul.f32.gmra.mxu0 %v995
        %v1042 = vpop.f32.mrf.mxu0
        %v1043 = vadd.f32 %v1023, %v1042
        %1044 = vdwg.mxu0
        %v1045 = vld [vmem:[%s635] sm:$0xff]
        %v1046 = vmul.f32 %v1043, 0.5
        %v1047 = vmul.f32 %v1046, 1.442695
        %v1048 = vpow.pop %v1047
        %v1049 = vmul.f32 %v1045, %v1048
        %v1050 = vadd.f32 %v1049, %v1015
        %1051 = vst.msk [vmem:[%s692] sm:$0xff] %vm732, %v1050
        %1052 = vst.msk [vmem:[%s699] sm:$0xff] %vm732, %v1015
        %1053 = vst.msk [vmem:[%s706] sm:$0xff] %vm732, %v1043
        %s1054 = sand.u32 %s341, 1
        %s1055 = scalar_lea.sflag [#allocation4], %s1054
        %s1056 = sand.u32 %s341, 1
        %s1057 = smul.addr %s1056, 8
        %s1058 = scalar_lea.vmem [#allocation10], %s1057
        %s1059 = sand.u32 %s40, 1
        %s1060 = scalar_lea.sflag [#allocation12], %s1059
        %s1061 = sand.u32 %s367, 1
        %s1062 = smul.addr %s1061, 8
        %s1063 = scalar_lea.vmem [#allocation11], %s1062
        %s1064 = sand.u32 %s40, 1
        %s1065 = scalar_lea.sflag [#allocation12], %s1064
        %s1066 = sand.u32 %s393, 1
        %s1067 = smul.addr %s1066, 8
        %s1068 = scalar_lea.vmem [#allocation13], %s1067
        %s1069 = sand.u32 %s40, 1
        %s1070 = scalar_lea.sflag [#allocation15], %s1069
        %s1071 = sand.u32 %s419, 1
        %s1072 = smul.addr %s1071, 16
        %s1073 = scalar_lea.vmem [#allocation14], %s1072
        %s1074 = sand.u32 %s40, 1
        %s1075 = scalar_lea.sflag [#allocation15], %s1074
        %s1076 = sand.u32 %s445, 1
        %s1077 = smul.addr %s1076, 16
        %s1078 = scalar_lea.vmem [#allocation16], %s1077
        // Predicated region
        $region93: #{gaussian_lstm_forward.1} parent=71 // pred_check
          %p1079 = pneg %p351
        $region94: #{gaussian_lstm_forward.1} parent=71 // pred_check_branch
          %1081 = sbr.rel (%p1079) target = $region96
        $region95: #{gaussian_lstm_forward.1} parent=71 // pred_region
          %1083 = vsyncadd %s1055, 0
          %s1084 = smul.addr %s40, 8
          %s1085 = scalar_lea.hbm %s13, %s1084
          %s1087 = sshll.u32 %s1058, 4
          %s1088 = int_to_ptr.vmem [resolvable:$true] %s1087
          %s1089 = sshll.u32 %s1085, 4
          %s1090 = int_to_ptr.hbm [resolvable:$true] %s1089
          %1092 = dma.vmem_to_hbm [thread:$0]  %s1088, 128, %s1090, %s1055
        $region96: #{gaussian_lstm_forward.1} parent=71 // pred_fallthru
          _
        // Predicated region
        $region97: #{gaussian_lstm_forward.1} parent=71 // pred_check
          %p1093 = pneg %p377
        $region98: #{gaussian_lstm_forward.1} parent=71 // pred_check_branch
          %1095 = sbr.rel (%p1093) target = $region100
        $region99: #{gaussian_lstm_forward.1} parent=71 // pred_region
          %1097 = vsyncadd %s1060, 0
          %s1098 = smul.addr %s40, 8
          %s1099 = scalar_lea.hbm %s14, %s1098
          %s1101 = sshll.u32 %s1063, 4
          %s1102 = int_to_ptr.vmem [resolvable:$true] %s1101
          %s1103 = sshll.u32 %s1099, 4
          %s1104 = int_to_ptr.hbm [resolvable:$true] %s1103
          %1106 = dma.vmem_to_hbm [thread:$0]  %s1102, 128, %s1104, %s1060
        $region100: #{gaussian_lstm_forward.1} parent=71 // pred_fallthru
          _
        // Predicated region
        $region101: #{gaussian_lstm_forward.1} parent=71 // pred_check
          %p1107 = pneg %p403
        $region102: #{gaussian_lstm_forward.1} parent=71 // pred_check_branch
          %1109 = sbr.rel (%p1107) target = $region104
        $region103: #{gaussian_lstm_forward.1} parent=71 // pred_region
          %1111 = vsyncadd %s1065, 0
          %s1112 = smul.addr %s40, 8
          %s1113 = scalar_lea.hbm %s15, %s1112
          %s1115 = sshll.u32 %s1068, 4
          %s1116 = int_to_ptr.vmem [resolvable:$true] %s1115
          %s1117 = sshll.u32 %s1113, 4
          %s1118 = int_to_ptr.hbm [resolvable:$true] %s1117
          %1120 = dma.vmem_to_hbm [thread:$0]  %s1116, 128, %s1118, %s1065
        $region104: #{gaussian_lstm_forward.1} parent=71 // pred_fallthru
          _
        // Predicated region
        $region105: #{gaussian_lstm_forward.1} parent=71 // pred_check
          %p1121 = pneg %p429
        $region106: #{gaussian_lstm_forward.1} parent=71 // pred_check_branch
          %1123 = sbr.rel (%p1121) target = $region108
        $region107: #{gaussian_lstm_forward.1} parent=71 // pred_region
          %1125 = vsyncadd %s1070, 0
          %s1126 = smul.addr %s40, 8
          %s1127 = scalar_lea.hbm %s16, %s1126
          %s1128 = sshll.u32 %s1073, 4
          %s1129 = int_to_ptr.vmem [resolvable:$true] %s1128
          %s1130 = sshll.u32 %s1127, 4
          %s1131 = int_to_ptr.hbm [resolvable:$true] %s1130
          %1136 = dma.vmem_to_hbm [thread:$0]  %s1129, 256, %s1131, %s1070, 128, 256, 8
        $region108: #{gaussian_lstm_forward.1} parent=71 // pred_fallthru
          _
        // Predicated region
        $region109: #{gaussian_lstm_forward.1} parent=71 // pred_check
          %p1137 = pneg %p455
        $region110: #{gaussian_lstm_forward.1} parent=71 // pred_check_branch
          %1139 = sbr.rel (%p1137) target = $region112
        $region111: #{gaussian_lstm_forward.1} parent=71 // pred_region
          %1141 = vsyncadd %s1075, 0
          %s1142 = smul.addr %s40, 8
          %s1143 = scalar_lea.hbm %s17, %s1142
          %s1144 = sshll.u32 %s1078, 4
          %s1145 = int_to_ptr.vmem [resolvable:$true] %s1144
          %s1146 = sshll.u32 %s1143, 4
          %s1147 = int_to_ptr.hbm [resolvable:$true] %s1146
          %1152 = dma.vmem_to_hbm [thread:$0]  %s1145, 256, %s1147, %s1075, 128, 256, 8
        $region112: #{gaussian_lstm_forward.1} parent=71 // pred_fallthru
          _
      $region72: #{gaussian_lstm_forward.1} parent=5 // pred_fallthru
        _
      %p1153 = scmp.le.s32.totalorder 2, %s35
      // Predicated region
      $region113: #{gaussian_lstm_forward.1} parent=5 // pred_check
        %p1154 = pneg %p1153
      $region114: #{gaussian_lstm_forward.1} parent=5 // pred_check_branch
        %1156 = sbr.rel (%p1154) target = $region116
      $region115: #{gaussian_lstm_forward.1} parent=5 // pred_region
        %s1157 = ssub.s32 %s35, 2
        // Predicated region
        $region117: #{gaussian_lstm_forward.1} parent=115 // pred_check
          %p1158 = pneg %p357
        $region118: #{gaussian_lstm_forward.1} parent=115 // pred_check_branch
          %1160 = sbr.rel (%p1158) target = $region120
        $region119: #{gaussian_lstm_forward.1} parent=115 // pred_region
          %s1161 = sand.u32 %s342, 1
          %s1162 = scalar_lea.sflag [#allocation4], %s1161
          %s1163 = sand.u32 %s342, 1
          %s1164 = smul.addr %s1163, 8
          %s1165 = scalar_lea.vmem [#allocation10], %s1164
          %1167 = dma.done %s1162, 128
        $region120: #{gaussian_lstm_forward.1} parent=115 // pred_fallthru
          _
        // Predicated region
        $region121: #{gaussian_lstm_forward.1} parent=115 // pred_check
          %p1168 = pneg %p383
        $region122: #{gaussian_lstm_forward.1} parent=115 // pred_check_branch
          %1170 = sbr.rel (%p1168) target = $region124
        $region123: #{gaussian_lstm_forward.1} parent=115 // pred_region
          %s1171 = sand.u32 %s41, 1
          %s1172 = scalar_lea.sflag [#allocation12], %s1171
          %s1173 = sand.u32 %s368, 1
          %s1174 = smul.addr %s1173, 8
          %s1175 = scalar_lea.vmem [#allocation11], %s1174
          %1177 = dma.done %s1172, 128
        $region124: #{gaussian_lstm_forward.1} parent=115 // pred_fallthru
          _
        // Predicated region
        $region125: #{gaussian_lstm_forward.1} parent=115 // pred_check
          %p1178 = pneg %p409
        $region126: #{gaussian_lstm_forward.1} parent=115 // pred_check_branch
          %1180 = sbr.rel (%p1178) target = $region128
        $region127: #{gaussian_lstm_forward.1} parent=115 // pred_region
          %s1181 = sand.u32 %s41, 1
          %s1182 = scalar_lea.sflag [#allocation12], %s1181
          %s1183 = sand.u32 %s394, 1
          %s1184 = smul.addr %s1183, 8
          %s1185 = scalar_lea.vmem [#allocation13], %s1184
          %1187 = dma.done %s1182, 128
        $region128: #{gaussian_lstm_forward.1} parent=115 // pred_fallthru
          _
        // Predicated region
        $region129: #{gaussian_lstm_forward.1} parent=115 // pred_check
          %p1188 = pneg %p435
        $region130: #{gaussian_lstm_forward.1} parent=115 // pred_check_branch
          %1190 = sbr.rel (%p1188) target = $region132
        $region131: #{gaussian_lstm_forward.1} parent=115 // pred_region
          %s1191 = sand.u32 %s41, 1
          %s1192 = scalar_lea.sflag [#allocation15], %s1191
          %s1193 = sand.u32 %s420, 1
          %s1194 = smul.addr %s1193, 16
          %s1195 = scalar_lea.vmem [#allocation14], %s1194
          %1197 = dma.done %s1192, 256
        $region132: #{gaussian_lstm_forward.1} parent=115 // pred_fallthru
          _
        // Predicated region
        $region133: #{gaussian_lstm_forward.1} parent=115 // pred_check
          %p1198 = pneg %p461
        $region134: #{gaussian_lstm_forward.1} parent=115 // pred_check_branch
          %1200 = sbr.rel (%p1198) target = $region136
        $region135: #{gaussian_lstm_forward.1} parent=115 // pred_region
          %s1201 = sand.u32 %s41, 1
          %s1202 = scalar_lea.sflag [#allocation15], %s1201
          %s1203 = sand.u32 %s446, 1
          %s1204 = smul.addr %s1203, 16
          %s1205 = scalar_lea.vmem [#allocation16], %s1204
          %1207 = dma.done %s1202, 256
        $region136: #{gaussian_lstm_forward.1} parent=115 // pred_fallthru
          _
      $region116: #{gaussian_lstm_forward.1} parent=5 // pred_fallthru
        _
    $region6: #{gaussian_lstm_forward.1} parent=1 // loop_footer
      %s39 = sadd.s32 1, %s35
    $region7: #{gaussian_lstm_forward.1} parent=1 // loop_footer_branch
      %34 = sbr.rel target = $region3
    $region8: #{gaussian_lstm_forward.1} parent=1 // loop_exit
      _
    %1208 = vsyncpa [#allocation3], 1
    %s1209 = scalar_lea.sflag [#allocation3], 1
    %1210 = vsyncpa %s1209, 1
    %1211 = vsyncpa [#allocation6], 1
    %1212 = vsyncpa [#allocation4], 1
    %s1213 = scalar_lea.sflag [#allocation4], 1
    %1214 = vsyncpa %s1213, 1
    %1215 = vsyncpa [#allocation12], 1
    %s1216 = scalar_lea.sflag [#allocation12], 1
    %1217 = vsyncpa %s1216, 1
    %1218 = vsyncpa [#allocation15], 1
    %s1219 = scalar_lea.sflag [#allocation15], 1
    %1220 = vsyncpa %s1219, 1

</llo_original>
